<compile_context>
chip_gen: v6e
topology: v6e:2x2x1
jax: 0.10.0
libtpu: 0.0.40
codegen_flags: <defaults>
</compile_context>

<pallas_src>
import functools
import math

import jax
import jax.numpy as jnp
from jax.experimental import pallas as pl
from jax.experimental.pallas import tpu as pltpu


# -----------------------------------------------------------------------------
# Fused kernel: grid = (batch_tiles, layer).  Activations (Bt, S, D) live in
# out_ref across the layer axis; layer 0 seeds them from the source embeddings.
# -----------------------------------------------------------------------------
def fused_encoder_kernel(H, eps,
                         x_ref, mask_ref,
                         wqkv_ref, wo_ref, w1_ref, w2_ref,
                         bqkv_ref, b1_ref, vec_ref,
                         out_ref):
    f32, bf16 = jnp.float32, jnp.bfloat16
    layer = pl.program_id(1)

    # Seed the resident activation block with the input embeddings at layer 0.
    # (src block index is constant along the layer axis -> DMA'd once per tile.)
    @pl.when(layer == 0)
    def _():
        out_ref[...] = x_ref[...]

    x = out_ref[...].astype(f32)                 # (Bt, S, D)
    Bt, S, D = x.shape
    hd = D // H
    N = Bt * H
    mask = mask_ref[...]                         # (Bt, 1, S) additive key mask, f32

    # Small per-layer parameters (packed streams).
    vec = vec_ref[0]                             # (6, D) f32
    bo, b2 = vec[0:1], vec[1:2]                  # (1, D)
    ln1w, ln1b = vec[2:3], vec[3:4]
    ln2w, ln2b = vec[4:5], vec[5:6]
    bqkv = bqkv_ref[0]                           # (1, 3D) f32 (Q slice pre-scaled)
    b1 = b1_ref[0]                               # (1, FF) f32

    # ---- fused QKV projection: lane-dense (Bt*S, D) @ (D, 3D), f32 accum ----
    x2 = x.reshape(Bt * S, D).astype(bf16)
    qkv = jnp.dot(x2, wqkv_ref[0], preferred_element_type=f32) + bqkv  # (Bt*S, 3D)

    def split_heads(t):                          # (Bt*S, D) -> (Bt*H, S, hd)
        t = t.reshape(Bt, S, H, hd)
        return jnp.transpose(t, (0, 2, 1, 3)).reshape(N, S, hd)

    q = split_heads(qkv[:, 0 * D:1 * D])         # scale already folded in
    k = split_heads(qkv[:, 1 * D:2 * D])
    v = split_heads(qkv[:, 2 * D:3 * D])

    # ---- attention scores + masked softmax (f32) ----------------------------
    s = jnp.einsum("nqd,nkd->nqk", q.astype(bf16), k.astype(bf16),
                   preferred_element_type=f32)                    # (N, S, S)
    s = s.reshape(Bt, H, S, S) + mask[:, None, :, :]              # mask padded keys
    m = jnp.max(s, axis=-1, keepdims=True)
    p = jnp.exp(s - m)
    p = p * pl.reciprocal(jnp.sum(p, axis=-1, keepdims=True), approx=True)

    ctx = jnp.einsum("nqk,nkd->nqd",
                     p.reshape(N, S, S).astype(bf16), v.astype(bf16),
                     preferred_element_type=f32)                  # (N, S, hd)

    # ---- head merge fused into output projection: one (Bt*S, D) @ (D, D) ----
    ctx = jnp.transpose(ctx.reshape(Bt, H, S, hd), (0, 2, 1, 3))  # (Bt, S, H, hd)
    ctx2 = ctx.reshape(Bt * S, D).astype(bf16)
    attn = jnp.dot(ctx2, wo_ref[0], preferred_element_type=f32) + bo
    attn = attn.reshape(Bt, S, D)

    # ---- residual + LayerNorm 1 (f32 elementwise) ----------------------------
    x = x + attn
    mu = jnp.mean(x, axis=-1, keepdims=True)
    var = jnp.mean((x - mu) ** 2, axis=-1, keepdims=True)
    x = (x - mu) * jax.lax.rsqrt(var + eps) * ln1w + ln1b

    # ---- feed-forward (relu), bf16 MXU operands, f32 accumulation ------------
    x2 = x.reshape(Bt * S, D).astype(bf16)
    h1 = jnp.dot(x2, w1_ref[0], preferred_element_type=f32) + b1
    h1 = jnp.maximum(h1, 0.0)
    ff = jnp.dot(h1.astype(bf16), w2_ref[0], preferred_element_type=f32) + b2
    ff = ff.reshape(Bt, S, D)

    # ---- residual + LayerNorm 2 ----------------------------------------------
    y = x + ff
    mu = jnp.mean(y, axis=-1, keepdims=True)
    var = jnp.mean((y - mu) ** 2, axis=-1, keepdims=True)
    y = (y - mu) * jax.lax.rsqrt(var + eps) * ln2w + ln2b

    out_ref[...] = y.astype(out_ref.dtype)


# -----------------------------------------------------------------------------
# Helpers.
# -----------------------------------------------------------------------------
def _vmem_limit_bytes():
    """~75% of physical VMEM (capped), so v7x (64 MiB) is not fully requested
    and v5e/v6e (128 MiB) get extra headroom for larger tiles."""
    try:
        cap = getattr(pltpu.get_tpu_info(), "vmem_capacity_bytes", None)
        if cap:
            return int(min(cap * 3 // 4, 112 * 1024 * 1024))
    except Exception:
        pass
    return 64 * 1024 * 1024


def _pick_batch_tile(B):
    """Largest divisor of B that is <= 8: amortizes the per-layer weight stream
    over Bt batch rows while keeping the activation block bounded."""
    for bt in range(min(B, 8), 0, -1):
        if B % bt == 0:
            return bt
    return 1


# -----------------------------------------------------------------------------
# Wrapper: one pallas_call for the whole encoder stack.
# -----------------------------------------------------------------------------
def transformer_encoder_pallas(src, src_key_padding_mask, stacked, H, eps=1e-5,
                               batch_tile=None):
    """src: (B,S,D) f32; src_key_padding_mask: (B,S) bool (True = padded key)."""
    B, S, D = src.shape
    L = stacked["wqkv"].shape[0]
    FF = stacked["w1"].shape[-1]
    assert D % H == 0

    Bt = _pick_batch_tile(B) if batch_tile is None else batch_tile
    assert B % Bt == 0

    mask_add = jnp.where(src_key_padding_mask, -1e30, 0.0).astype(jnp.float32)
    mask_add = mask_add.reshape(B, 1, S)

    kernel = functools.partial(fused_encoder_kernel, H, eps)

    def wspec(a, b):   # per-layer weight stream, constant over the batch axis
        return pl.BlockSpec((1, a, b), lambda i, l: (l, 0, 0))

    act_spec = pl.BlockSpec((Bt, S, D), lambda i, l: (i, 0, 0))
    mask_spec = pl.BlockSpec((Bt, 1, S), lambda i, l: (i, 0, 0))

    return pl.pallas_call(
        kernel,
        out_shape=jax.ShapeDtypeStruct((B, S, D), src.dtype),
        grid=(B // Bt, L),
        in_specs=[
            act_spec, mask_spec,
            wspec(D, 3 * D),      # Wqkv (bf16, Q slice pre-scaled)
            wspec(D, D),          # Wo   (bf16)
            wspec(D, FF),         # W1   (bf16)
            wspec(FF, D),         # W2   (bf16)
            wspec(1, 3 * D),      # bqkv (f32)
            wspec(1, FF),         # b1   (f32)
            wspec(6, D),          # [bo, b2, ln1w, ln1b, ln2w, ln2b] (f32)
        ],
        out_specs=pl.BlockSpec((Bt, S, D), lambda i, l: (i, 0, 0)),
        compiler_params=pltpu.CompilerParams(
            dimension_semantics=("parallel", "arbitrary"),
            vmem_limit_bytes=_vmem_limit_bytes(),
        ),
    )(src, mask_add,
      stacked["wqkv"], stacked["wo"], stacked["w1"], stacked["w2"],
      stacked["bqkv"], stacked["b1"], stacked["vec"])


# -----------------------------------------------------------------------------
# Parameter packing: stack layers, fold 1/sqrt(hd) into the Q slice of Wqkv /
# bqkv, store matmul weights in bf16, pack small vectors into one stream.
# -----------------------------------------------------------------------------
def stack_and_pack_params(layer_params, D, H):
    hd = D // H
    scale = 1.0 / math.sqrt(hd)
    col_scale = jnp.concatenate(
        [jnp.full((D,), scale, jnp.float32), jnp.ones((2 * D,), jnp.float32)])

    wqkv_l, bqkv_l, wo_l, w1_l, b1_l, w2_l, vec_l = [], [], [], [], [], [], []
    for p in layer_params:
        wqkv_l.append(p["wqkv"] * col_scale[None, :])
        bqkv_l.append(p["bqkv"] * col_scale[None, :])
        wo_l.append(p["wo"])
        w1_l.append(p["w1"])
        b1_l.append(p["b1"])
        w2_l.append(p["w2"])
        vec_l.append(jnp.concatenate(
            [p["bo"], p["b2"], p["ln1w"], p["ln1b"], p["ln2w"], p["ln2b"]],
            axis=0))                                   # (6, D)

    bf16, f32 = jnp.bfloat16, jnp.float32
    return {
        "wqkv": jnp.stack(wqkv_l, 0).astype(bf16),     # (L, D, 3D)
        "wo":   jnp.stack(wo_l, 0).astype(bf16),       # (L, D, D)
        "w1":   jnp.stack(w1_l, 0).astype(bf16),       # (L, D, FF)
        "w2":   jnp.stack(w2_l, 0).astype(bf16),       # (L, FF, D)
        "bqkv": jnp.stack(bqkv_l, 0).astype(f32),      # (L, 1, 3D)
        "b1":   jnp.stack(b1_l, 0).astype(f32),        # (L, 1, FF)
        "vec":  jnp.stack(vec_l, 0).astype(f32),       # (L, 6, D)
    }


# -----------------------------------------------------------------------------
# Pure-JAX reference mirroring the kernel's mixed precision (bf16 MXU operands,
# f32 accumulation / softmax / LayerNorm) — standard PyTorch encoder math.
# -----------------------------------------------------------------------------
def ref_encoder(src, src_key_padding_mask, layer_params, H, eps=1e-5,
                mxu_dtype=jnp.bfloat16):
    B, S, D = src.shape
    hd = D // H
    mask_add = jnp.where(src_key_padding_mask, -1e30, 0.0)[:, None, None, :]

    def mm(a, w):
        return jnp.dot(a.astype(mxu_dtype), w.astype(mxu_dtype),
                       preferred_element_type=jnp.float32)

    def ln(x, w, b):
        mu = jnp.mean(x, axis=-1, keepdims=True)
        var = jnp.mean((x - mu) ** 2, axis=-1, keepdims=True)
        return (x - mu) * jax.lax.rsqrt(var + eps) * w[0] + b[0]

    x = src.astype(jnp.float32)
    for p in layer_params:
        qkv = mm(x, p["wqkv"]) + p["bqkv"][0]
        q, k, v = jnp.split(qkv, 3, axis=-1)
        sp = lambda t: t.reshape(B, S, H, hd).transpose(0, 2, 1, 3)
        q, k, v = sp(q), sp(k), sp(v)
        s = jnp.einsum("bhqd,bhkd->bhqk", q.astype(mxu_dtype), k.astype(mxu_dtype),
                       preferred_element_type=jnp.float32) / math.sqrt(hd)
        s = s + mask_add
        a = jax.nn.softmax(s, axis=-1)
        o = jnp.einsum("bhqk,bhkd->bhqd", a.astype(mxu_dtype), v.astype(mxu_dtype),
                       preferred_element_type=jnp.float32)
        o = o.transpose(0, 2, 1, 3).reshape(B, S, D)
        o = mm(o, p["wo"]) + p["bo"][0]
        x = ln(x + o, p["ln1w"], p["ln1b"])
        h1 = jnp.maximum(mm(x, p["w1"]) + p["b1"][0], 0.0)
        ff = mm(h1, p["w2"]) + p["b2"][0]
        x = ln(x + ff, p["ln2w"], p["ln2b"])
    return x


# -----------------------------------------------------------------------------
# Deterministic parameter init (shapes follow nn.TransformerEncoderLayer).
# -----------------------------------------------------------------------------
def init_layer_params(key, D, FF):
    ks = jax.random.split(key, 8)
    u = lambda k, shape, s: jax.random.uniform(k, shape, jnp.float32, -s, s)
    return {
        "wqkv": u(ks[0], (D, 3 * D), 1.0 / math.sqrt(D)),
        "bqkv": u(ks[1], (1, 3 * D), 1.0 / math.sqrt(D)),
        "wo":   u(ks[2], (D, D),     1.0 / math.sqrt(D)),
        "bo":   u(ks[3], (1, D),     1.0 / math.sqrt(D)),
        "w1":   u(ks[4], (D, FF),    1.0 / math.sqrt(D)),
        "b1":   u(ks[5], (1, FF),    1.0 / math.sqrt(D)),
        "w2":   u(ks[6], (FF, D),    1.0 / math.sqrt(FF)),
        "b2":   u(ks[7], (1, D),     1.0 / math.sqrt(FF)),
        "ln1w": jnp.ones((1, D), jnp.float32),
        "ln1b": jnp.zeros((1, D), jnp.float32),
        "ln2w": jnp.ones((1, D), jnp.float32),
        "ln2b": jnp.zeros((1, D), jnp.float32),
    }


if __name__ == "__main__":
    # Small config: d_model=32, nhead=4, num_layers=2, dim_feedforward=64, seq=8, batch=2
    B, S, D, H, FF, L = 2, 8, 32, 4, 64, 2

    key = jax.random.PRNGKey(0)
    k_src, k_par = jax.random.split(key)
    src = jax.random.normal(k_src, (B, S, D), jnp.float32)

    # key padding mask: True = padded position (ignored as attention key)
    lengths = jnp.array([S, S - 2])
    src_key_padding_mask = jnp.arange(S)[None, :] >= lengths[:, None]   # (B, S) bool

    layer_keys = jax.random.split(k_par, L)
    layer_params = [init_layer_params(layer_keys[i], D, FF) for i in range(L)]
    stacked = stack_and_pack_params(layer_params, D, H)

    out = transformer_encoder_pallas(src, src_key_padding_mask, stacked, H)
    out = jax.block_until_ready(out)

    ref = ref_encoder(src, src_key_padding_mask, layer_params, H)
    assert out.shape == (B, S, D)
    assert bool(jnp.all(jnp.isfinite(out)))
    max_err = float(jnp.max(jnp.abs(out - ref)))
    assert bool(jnp.allclose(out, ref, atol=2e-2, rtol=2e-2)), \
        f"mismatch vs reference (max abs err {max_err})"

    print("KERNEL_OK")
</pallas_src>

<mosaic_0001>
module attributes {stable_mosaic.version = 11 : i64} {
  func.func @fused_encoder_kernel(%arg0: i32, %arg1: i32, %arg2: memref<2x8x32xf32, #tpu.memory_space<vmem>>, %arg3: memref<2x1x8xf32, #tpu.memory_space<vmem>>, %arg4: memref<1x32x96xbf16, #tpu.memory_space<vmem>>, %arg5: memref<1x32x32xbf16, #tpu.memory_space<vmem>>, %arg6: memref<1x32x64xbf16, #tpu.memory_space<vmem>>, %arg7: memref<1x64x32xbf16, #tpu.memory_space<vmem>>, %arg8: memref<1x1x96xf32, #tpu.memory_space<vmem>>, %arg9: memref<1x1x64xf32, #tpu.memory_space<vmem>>, %arg10: memref<1x6x32xf32, #tpu.memory_space<vmem>>, %arg11: memref<2x8x32xf32, #tpu.memory_space<vmem>>) attributes {dimension_semantics = [#tpu.dimension_semantics<parallel>, #tpu.dimension_semantics<arbitrary>], iteration_bounds = array<i64: 1, 2>, scalar_prefetch = 0 : i64, scratch_operands = 0 : i64, tpu.core_type = #tpu.core_type<tc>, window_params = [{transform_indices = @transform_0, window_bounds = array<i64: 2, 8, 32>}, {transform_indices = @transform_1, window_bounds = array<i64: 2, 1, 8>}, {transform_indices = @transform_2, window_bounds = array<i64: 1, 32, 96>}, {transform_indices = @transform_3, window_bounds = array<i64: 1, 32, 32>}, {transform_indices = @transform_4, window_bounds = array<i64: 1, 32, 64>}, {transform_indices = @transform_5, window_bounds = array<i64: 1, 64, 32>}, {transform_indices = @transform_6, window_bounds = array<i64: 1, 1, 96>}, {transform_indices = @transform_7, window_bounds = array<i64: 1, 1, 64>}, {transform_indices = @transform_8, window_bounds = array<i64: 1, 6, 32>}, {transform_indices = @transform_9, window_bounds = array<i64: 2, 8, 32>}]} {
    %c0_i32 = arith.constant 0 : i32
    %0 = arith.cmpi eq, %arg1, %c0_i32 : i32
    %1 = arith.extui %0 : i1 to i32
    %c0_i32_0 = arith.constant 0 : i32
    %2 = arith.cmpi ne, %1, %c0_i32_0 : i32
    scf.if %2 {
      %c0_48 = arith.constant 0 : index
      %c0_49 = arith.constant 0 : index
      %c0_50 = arith.constant 0 : index
      %134 = vector.load %arg2[%c0_48, %c0_49, %c0_50] : memref<2x8x32xf32, #tpu.memory_space<vmem>>, vector<2x8x32xf32>
      %c0_51 = arith.constant 0 : index
      %c0_52 = arith.constant 0 : index
      %c0_53 = arith.constant 0 : index
      %135 = vector.load %arg11[%c0_51, %c0_52, %c0_53] : memref<2x8x32xf32, #tpu.memory_space<vmem>>, vector<2x8x32xf32>
      tpu.vector_store %arg11[%c0_51, %c0_52, %c0_53], %134 {strides = array<i32>} : memref<2x8x32xf32, #tpu.memory_space<vmem>>, vector<2x8x32xf32>,
    } else {
    }
    %c0 = arith.constant 0 : index
    %c0_1 = arith.constant 0 : index
    %c0_2 = arith.constant 0 : index
    %3 = vector.load %arg11[%c0, %c0_1, %c0_2] : memref<2x8x32xf32, #tpu.memory_space<vmem>>, vector<2x8x32xf32>
    %c0_3 = arith.constant 0 : index
    %c0_4 = arith.constant 0 : index
    %c0_5 = arith.constant 0 : index
    %4 = vector.load %arg3[%c0_3, %c0_4, %c0_5] : memref<2x1x8xf32, #tpu.memory_space<vmem>>, vector<2x1x8xf32>
    %c0_6 = arith.constant 0 : index
    %c0_7 = arith.constant 0 : index
    %c0_8 = arith.constant 0 : index
    %5 = vector.load %arg10[%c0_6, %c0_7, %c0_8] : memref<1x6x32xf32, #tpu.memory_space<vmem>>, vector<1x6x32xf32>
    %6 = vector.shape_cast %5 : vector<1x6x32xf32> to vector<6x32xf32>
    %7 = vector.extract_strided_slice %6 {offsets = [0, 0], sizes = [1, 32], strides = [1, 1]} : vector<6x32xf32> to vector<1x32xf32>
    %8 = vector.extract_strided_slice %6 {offsets = [1, 0], sizes = [1, 32], strides = [1, 1]} : vector<6x32xf32> to vector<1x32xf32>
    %9 = vector.extract_strided_slice %6 {offsets = [2, 0], sizes = [1, 32], strides = [1, 1]} : vector<6x32xf32> to vector<1x32xf32>
    %10 = vector.extract_strided_slice %6 {offsets = [3, 0], sizes = [1, 32], strides = [1, 1]} : vector<6x32xf32> to vector<1x32xf32>
    %11 = vector.extract_strided_slice %6 {offsets = [4, 0], sizes = [1, 32], strides = [1, 1]} : vector<6x32xf32> to vector<1x32xf32>
    %12 = vector.extract_strided_slice %6 {offsets = [5, 0], sizes = [1, 32], strides = [1, 1]} : vector<6x32xf32> to vector<1x32xf32>
    %c0_9 = arith.constant 0 : index
    %c0_10 = arith.constant 0 : index
    %c0_11 = arith.constant 0 : index
    %13 = vector.load %arg8[%c0_9, %c0_10, %c0_11] : memref<1x1x96xf32, #tpu.memory_space<vmem>>, vector<1x1x96xf32>
    %14 = vector.shape_cast %13 : vector<1x1x96xf32> to vector<1x96xf32>
    %c0_12 = arith.constant 0 : index
    %c0_13 = arith.constant 0 : index
    %c0_14 = arith.constant 0 : index
    %15 = vector.load %arg9[%c0_12, %c0_13, %c0_14] : memref<1x1x64xf32, #tpu.memory_space<vmem>>, vector<1x1x64xf32>
    %16 = vector.shape_cast %15 : vector<1x1x64xf32> to vector<1x64xf32>
    %17 = vector.shape_cast %3 : vector<2x8x32xf32> to vector<16x32xf32>
    %18 = arith.truncf %17 : vector<16x32xf32> to vector<16x32xbf16>
    %c0_15 = arith.constant 0 : index
    %c0_16 = arith.constant 0 : index
    %c0_17 = arith.constant 0 : index
    %19 = vector.load %arg4[%c0_15, %c0_16, %c0_17] : memref<1x32x96xbf16, #tpu.memory_space<vmem>>, vector<1x32x96xbf16>
    %20 = vector.shape_cast %19 : vector<1x32x96xbf16> to vector<32x96xbf16>
    %cst = arith.constant dense<0.000000e+00> : vector<16x96xf32>
    %21 = tpu.matmul %18, %20, %cst {dimension_numbers = #tpu.dot_dimension_numbers<[1], [0], [0], [1], [0, 0, 1, 1], [], []>} : vector<16x32xbf16>, vector<32x96xbf16>, vector<16x96xf32> -> vector<16x96xf32>
    %22 = vector.broadcast %14 : vector<1x96xf32> to vector<16x96xf32>
    %23 = arith.addf %21, %22 : vector<16x96xf32>
    %24 = vector.extract_strided_slice %23 {offsets = [0, 0], sizes = [16, 32], strides = [1, 1]} : vector<16x96xf32> to vector<16x32xf32>
    %25 = vector.shape_cast %24 : vector<16x32xf32> to vector<2x8x4x8xf32>
    %26 = tpu.transpose %25, [0, 2, 1, 3] : vector<2x8x4x8xf32> -> vector<2x4x8x8xf32>
    %27 = vector.shape_cast %26 : vector<2x4x8x8xf32> to vector<8x8x8xf32>
    %28 = vector.extract_strided_slice %23 {offsets = [0, 32], sizes = [16, 32], strides = [1, 1]} : vector<16x96xf32> to vector<16x32xf32>
    %29 = vector.shape_cast %28 : vector<16x32xf32> to vector<2x8x4x8xf32>
    %30 = tpu.transpose %29, [0, 2, 1, 3] : vector<2x8x4x8xf32> -> vector<2x4x8x8xf32>
    %31 = vector.shape_cast %30 : vector<2x4x8x8xf32> to vector<8x8x8xf32>
    %32 = vector.extract_strided_slice %23 {offsets = [0, 64], sizes = [16, 32], strides = [1, 1]} : vector<16x96xf32> to vector<16x32xf32>
    %33 = vector.shape_cast %32 : vector<16x32xf32> to vector<2x8x4x8xf32>
    %34 = tpu.transpose %33, [0, 2, 1, 3] : vector<2x8x4x8xf32> -> vector<2x4x8x8xf32>
    %35 = vector.shape_cast %34 : vector<2x4x8x8xf32> to vector<8x8x8xf32>
    %36 = arith.truncf %27 : vector<8x8x8xf32> to vector<8x8x8xbf16>
    %37 = arith.truncf %31 : vector<8x8x8xf32> to vector<8x8x8xbf16>
    "tpu.trace_start"() <{level = 10 : i32, message = "nqd,nkd->nqk"}> : () -> ()
    %cst_18 = arith.constant dense<0.000000e+00> : vector<8x8x8xf32>
    %38 = tpu.matmul %36, %37, %cst_18 {dimension_numbers = #tpu.dot_dimension_numbers<[2], [2], [1], [1], [0, 0, 0, 1, 1, 1], [0], [0]>} : vector<8x8x8xbf16>, vector<8x8x8xbf16>, vector<8x8x8xf32> -> vector<8x8x8xf32>
    "tpu.trace_stop"() : () -> ()
    %39 = vector.shape_cast %38 : vector<8x8x8xf32> to vector<2x4x8x8xf32>
    %40 = vector.shape_cast %4 : vector<2x1x8xf32> to vector<2x1x1x8xf32>
    %41 = vector.broadcast %40 : vector<2x1x1x8xf32> to vector<2x4x8x8xf32>
    %42 = arith.addf %39, %41 : vector<2x4x8x8xf32>
    %cst_19 = arith.constant dense<0xFF800000> : vector<2x4x8xf32>
    %43 = vector.multi_reduction <maximumf>, %42, %cst_19 [3] : vector<2x4x8x8xf32> to vector<2x4x8xf32>
    %44 = vector.shape_cast %43 : vector<2x4x8xf32> to vector<2x4x8x1xf32>
    %45 = vector.broadcast %44 : vector<2x4x8x1xf32> to vector<2x4x8x8xf32>
    %46 = arith.subf %42, %45 : vector<2x4x8x8xf32>
    %47 = math.exp %46 : vector<2x4x8x8xf32>
    %cst_20 = arith.constant dense<0.000000e+00> : vector<2x4x8xf32>
    %48 = vector.multi_reduction <add>, %47, %cst_20 [3] : vector<2x4x8x8xf32> to vector<2x4x8xf32>
    %49 = vector.shape_cast %48 : vector<2x4x8xf32> to vector<2x4x8x1xf32>
    %50 = tpu.reciprocal %49 {approx = true} : vector<2x4x8x1xf32> -> vector<2x4x8x1xf32>
    %51 = vector.broadcast %50 : vector<2x4x8x1xf32> to vector<2x4x8x8xf32>
    %52 = arith.mulf %47, %51 : vector<2x4x8x8xf32>
    %53 = vector.shape_cast %52 : vector<2x4x8x8xf32> to vector<8x8x8xf32>
    %54 = arith.truncf %53 : vector<8x8x8xf32> to vector<8x8x8xbf16>
    %55 = arith.truncf %35 : vector<8x8x8xf32> to vector<8x8x8xbf16>
    "tpu.trace_start"() <{level = 10 : i32, message = "nqk,nkd->nqd"}> : () -> ()
    %cst_21 = arith.constant dense<0.000000e+00> : vector<8x8x8xf32>
    %56 = tpu.matmul %54, %55, %cst_21 {dimension_numbers = #tpu.dot_dimension_numbers<[2], [1], [1], [2], [0, 0, 0, 1, 1, 2], [0], [0]>} : vector<8x8x8xbf16>, vector<8x8x8xbf16>, vector<8x8x8xf32> -> vector<8x8x8xf32>
    "tpu.trace_stop"() : () -> ()
    %57 = vector.shape_cast %56 : vector<8x8x8xf32> to vector<2x4x8x8xf32>
    %58 = tpu.transpose %57, [0, 2, 1, 3] : vector<2x4x8x8xf32> -> vector<2x8x4x8xf32>
    %59 = vector.shape_cast %58 : vector<2x8x4x8xf32> to vector<16x32xf32>
    %60 = arith.truncf %59 : vector<16x32xf32> to vector<16x32xbf16>
    %c0_22 = arith.constant 0 : index
    %c0_23 = arith.constant 0 : index
    %c0_24 = arith.constant 0 : index
    %61 = vector.load %arg5[%c0_22, %c0_23, %c0_24] : memref<1x32x32xbf16, #tpu.memory_space<vmem>>, vector<1x32x32xbf16>
    %62 = vector.shape_cast %61 : vector<1x32x32xbf16> to vector<32x32xbf16>
    %cst_25 = arith.constant dense<0.000000e+00> : vector<16x32xf32>
    %63 = tpu.matmul %60, %62, %cst_25 {dimension_numbers = #tpu.dot_dimension_numbers<[1], [0], [0], [1], [0, 0, 1, 1], [], []>} : vector<16x32xbf16>, vector<32x32xbf16>, vector<16x32xf32> -> vector<16x32xf32>
    %64 = vector.broadcast %7 : vector<1x32xf32> to vector<16x32xf32>
    %65 = arith.addf %63, %64 : vector<16x32xf32>
    %66 = vector.shape_cast %65 : vector<16x32xf32> to vector<2x8x32xf32>
    %67 = arith.addf %3, %66 : vector<2x8x32xf32>
    %cst_26 = arith.constant dense<0.000000e+00> : vector<2x8xf32>
    %68 = vector.multi_reduction <add>, %67, %cst_26 [2] : vector<2x8x32xf32> to vector<2x8xf32>
    %69 = vector.shape_cast %68 : vector<2x8xf32> to vector<2x8x1xf32>
    %cst_27 = arith.constant 3.200000e+01 : f32
    %70 = vector.broadcast %cst_27 : f32 to vector<2x8x1xf32>
    %71 = arith.divf %69, %70 : vector<2x8x1xf32>
    %72 = vector.broadcast %71 : vector<2x8x1xf32> to vector<2x8x32xf32>
    %73 = arith.subf %67, %72 : vector<2x8x32xf32>
    %74 = arith.mulf %73, %73 : vector<2x8x32xf32>
    %cst_28 = arith.constant dense<0.000000e+00> : vector<2x8xf32>
    %75 = vector.multi_reduction <add>, %74, %cst_28 [2] : vector<2x8x32xf32> to vector<2x8xf32>
    %76 = vector.shape_cast %75 : vector<2x8xf32> to vector<2x8x1xf32>
    %cst_29 = arith.constant 3.200000e+01 : f32
    %77 = vector.broadcast %cst_29 : f32 to vector<2x8x1xf32>
    %78 = arith.divf %76, %77 : vector<2x8x1xf32>
    %79 = vector.broadcast %71 : vector<2x8x1xf32> to vector<2x8x32xf32>
    %80 = arith.subf %67, %79 : vector<2x8x32xf32>
    %cst_30 = arith.constant 9.99999974E-6 : f32
    %81 = vector.broadcast %cst_30 : f32 to vector<2x8x1xf32>
    %82 = arith.addf %78, %81 : vector<2x8x1xf32>
    %83 = math.rsqrt %82 : vector<2x8x1xf32>
    %84 = vector.broadcast %83 : vector<2x8x1xf32> to vector<2x8x32xf32>
    %85 = arith.mulf %80, %84 : vector<2x8x32xf32>
    %86 = vector.shape_cast %9 : vector<1x32xf32> to vector<1x1x32xf32>
    %87 = vector.broadcast %86 : vector<1x1x32xf32> to vector<2x8x32xf32>
    %88 = arith.mulf %85, %87 : vector<2x8x32xf32>
    %89 = vector.shape_cast %10 : vector<1x32xf32> to vector<1x1x32xf32>
    %90 = vector.broadcast %89 : vector<1x1x32xf32> to vector<2x8x32xf32>
    %91 = arith.addf %88, %90 : vector<2x8x32xf32>
    %92 = vector.shape_cast %91 : vector<2x8x32xf32> to vector<16x32xf32>
    %93 = arith.truncf %92 : vector<16x32xf32> to vector<16x32xbf16>
    %c0_31 = arith.constant 0 : index
    %c0_32 = arith.constant 0 : index
    %c0_33 = arith.constant 0 : index
    %94 = vector.load %arg6[%c0_31, %c0_32, %c0_33] : memref<1x32x64xbf16, #tpu.memory_space<vmem>>, vector<1x32x64xbf16>
    %95 = vector.shape_cast %94 : vector<1x32x64xbf16> to vector<32x64xbf16>
    %cst_34 = arith.constant dense<0.000000e+00> : vector<16x64xf32>
    %96 = tpu.matmul %93, %95, %cst_34 {dimension_numbers = #tpu.dot_dimension_numbers<[1], [0], [0], [1], [0, 0, 1, 1], [], []>} : vector<16x32xbf16>, vector<32x64xbf16>, vector<16x64xf32> -> vector<16x64xf32>
    %97 = vector.broadcast %16 : vector<1x64xf32> to vector<16x64xf32>
    %98 = arith.addf %96, %97 : vector<16x64xf32>
    %cst_35 = arith.constant 0.000000e+00 : f32
    %99 = vector.broadcast %cst_35 : f32 to vector<16x64xf32>
    %100 = arith.maximumf %98, %99 : vector<16x64xf32>
    %101 = arith.truncf %100 : vector<16x64xf32> to vector<16x64xbf16>
    %c0_36 = arith.constant 0 : index
    %c0_37 = arith.constant 0 : index
    %c0_38 = arith.constant 0 : index
    %102 = vector.load %arg7[%c0_36, %c0_37, %c0_38] : memref<1x64x32xbf16, #tpu.memory_space<vmem>>, vector<1x64x32xbf16>
    %103 = vector.shape_cast %102 : vector<1x64x32xbf16> to vector<64x32xbf16>
    %cst_39 = arith.constant dense<0.000000e+00> : vector<16x32xf32>
    %104 = tpu.matmul %101, %103, %cst_39 {dimension_numbers = #tpu.dot_dimension_numbers<[1], [0], [0], [1], [0, 0, 1, 1], [], []>} : vector<16x64xbf16>, vector<64x32xbf16>, vector<16x32xf32> -> vector<16x32xf32>
    %105 = vector.broadcast %8 : vector<1x32xf32> to vector<16x32xf32>
    %106 = arith.addf %104, %105 : vector<16x32xf32>
    %107 = vector.shape_cast %106 : vector<16x32xf32> to vector<2x8x32xf32>
    %108 = arith.addf %91, %107 : vector<2x8x32xf32>
    %cst_40 = arith.constant dense<0.000000e+00> : vector<2x8xf32>
    %109 = vector.multi_reduction <add>, %108, %cst_40 [2] : vector<2x8x32xf32> to vector<2x8xf32>
    %110 = vector.shape_cast %109 : vector<2x8xf32> to vector<2x8x1xf32>
    %cst_41 = arith.constant 3.200000e+01 : f32
    %111 = vector.broadcast %cst_41 : f32 to vector<2x8x1xf32>
    %112 = arith.divf %110, %111 : vector<2x8x1xf32>
    %113 = vector.broadcast %112 : vector<2x8x1xf32> to vector<2x8x32xf32>
    %114 = arith.subf %108, %113 : vector<2x8x32xf32>
    %115 = arith.mulf %114, %114 : vector<2x8x32xf32>
    %cst_42 = arith.constant dense<0.000000e+00> : vector<2x8xf32>
    %116 = vector.multi_reduction <add>, %115, %cst_42 [2] : vector<2x8x32xf32> to vector<2x8xf32>
    %117 = vector.shape_cast %116 : vector<2x8xf32> to vector<2x8x1xf32>
    %cst_43 = arith.constant 3.200000e+01 : f32
    %118 = vector.broadcast %cst_43 : f32 to vector<2x8x1xf32>
    %119 = arith.divf %117, %118 : vector<2x8x1xf32>
    %120 = vector.broadcast %112 : vector<2x8x1xf32> to vector<2x8x32xf32>
    %121 = arith.subf %108, %120 : vector<2x8x32xf32>
    %cst_44 = arith.constant 9.99999974E-6 : f32
    %122 = vector.broadcast %cst_44 : f32 to vector<2x8x1xf32>
    %123 = arith.addf %119, %122 : vector<2x8x1xf32>
    %124 = math.rsqrt %123 : vector<2x8x1xf32>
    %125 = vector.broadcast %124 : vector<2x8x1xf32> to vector<2x8x32xf32>
    %126 = arith.mulf %121, %125 : vector<2x8x32xf32>
    %127 = vector.shape_cast %11 : vector<1x32xf32> to vector<1x1x32xf32>
    %128 = vector.broadcast %127 : vector<1x1x32xf32> to vector<2x8x32xf32>
    %129 = arith.mulf %126, %128 : vector<2x8x32xf32>
    %130 = vector.shape_cast %12 : vector<1x32xf32> to vector<1x1x32xf32>
    %131 = vector.broadcast %130 : vector<1x1x32xf32> to vector<2x8x32xf32>
    %132 = arith.addf %129, %131 : vector<2x8x32xf32>
    %c0_45 = arith.constant 0 : index
    %c0_46 = arith.constant 0 : index
    %c0_47 = arith.constant 0 : index
    %133 = vector.load %arg11[%c0_45, %c0_46, %c0_47] : memref<2x8x32xf32, #tpu.memory_space<vmem>>, vector<2x8x32xf32>
    tpu.vector_store %arg11[%c0_45, %c0_46, %c0_47], %132 {strides = array<i32>} : memref<2x8x32xf32, #tpu.memory_space<vmem>>, vector<2x8x32xf32>,
    return
  }
  func.func @transform_0(%arg0: i32, %arg1: i32) -> (i32, i32, i32) {
    %c0_i32 = arith.constant 0 : i32
    %c0_i32_0 = arith.constant 0 : i32
    %c0_i32_1 = arith.constant 0 : i32
    return %arg0, %c0_i32, %c0_i32_0 : i32, i32, i32
  }
  func.func @transform_1(%arg0: i32, %arg1: i32) -> (i32, i32, i32) {
    %c0_i32 = arith.constant 0 : i32
    %c0_i32_0 = arith.constant 0 : i32
    %c0_i32_1 = arith.constant 0 : i32
    return %arg0, %c0_i32, %c0_i32_0 : i32, i32, i32
  }
  func.func @transform_2(%arg0: i32, %arg1: i32) -> (i32, i32, i32) {
    %c0_i32 = arith.constant 0 : i32
    %c0_i32_0 = arith.constant 0 : i32
    %c0_i32_1 = arith.constant 0 : i32
    return %arg1, %c0_i32, %c0_i32_0 : i32, i32, i32
  }
  func.func @transform_3(%arg0: i32, %arg1: i32) -> (i32, i32, i32) {
    %c0_i32 = arith.constant 0 : i32
    %c0_i32_0 = arith.constant 0 : i32
    %c0_i32_1 = arith.constant 0 : i32
    return %arg1, %c0_i32, %c0_i32_0 : i32, i32, i32
  }
  func.func @transform_4(%arg0: i32, %arg1: i32) -> (i32, i32, i32) {
    %c0_i32 = arith.constant 0 : i32
    %c0_i32_0 = arith.constant 0 : i32
    %c0_i32_1 = arith.constant 0 : i32
    return %arg1, %c0_i32, %c0_i32_0 : i32, i32, i32
  }
  func.func @transform_5(%arg0: i32, %arg1: i32) -> (i32, i32, i32) {
    %c0_i32 = arith.constant 0 : i32
    %c0_i32_0 = arith.constant 0 : i32
    %c0_i32_1 = arith.constant 0 : i32
    return %arg1, %c0_i32, %c0_i32_0 : i32, i32, i32
  }
  func.func @transform_6(%arg0: i32, %arg1: i32) -> (i32, i32, i32) {
    %c0_i32 = arith.constant 0 : i32
    %c0_i32_0 = arith.constant 0 : i32
    %c0_i32_1 = arith.constant 0 : i32
    return %arg1, %c0_i32, %c0_i32_0 : i32, i32, i32
  }
  func.func @transform_7(%arg0: i32, %arg1: i32) -> (i32, i32, i32) {
    %c0_i32 = arith.constant 0 : i32
    %c0_i32_0 = arith.constant 0 : i32
    %c0_i32_1 = arith.constant 0 : i32
    return %arg1, %c0_i32, %c0_i32_0 : i32, i32, i32
  }
  func.func @transform_8(%arg0: i32, %arg1: i32) -> (i32, i32, i32) {
    %c0_i32 = arith.constant 0 : i32
    %c0_i32_0 = arith.constant 0 : i32
    %c0_i32_1 = arith.constant 0 : i32
    return %arg1, %c0_i32, %c0_i32_0 : i32, i32, i32
  }
  func.func @transform_9(%arg0: i32, %arg1: i32) -> (i32, i32, i32) {
    %c0_i32 = arith.constant 0 : i32
    %c0_i32_0 = arith.constant 0 : i32
    %c0_i32_1 = arith.constant 0 : i32
    return %arg0, %c0_i32, %c0_i32_0 : i32, i32, i32
  }
}

</mosaic_0001>

<llo_original>
// kernel: tpu_custom_call.1
$region0: #{tpu_custom_call.1}
  #allocation0 [shape = 'u32[]', space=smem, size = 0x4, offset = 0x4, fixed_abs, tag = 'smem constant byte address 0x4 - core index']
  #allocation1 [shape = 'u32[144,128]{1,0:T(1,128)}', space=vmem, size = 0x12000, scoped, tag = 'internal scratch']
  %s0 = inlined_call_operand.hbm [shape: f32[2,8,32], index: 0, kind: input, shape index: {}]
  %s1 = inlined_call_operand.vmem [shape: f32[2,1,8], index: 1, kind: input, shape index: {}]
  %s2 = inlined_call_operand.vmem [shape: bf16[2,32,96], index: 2, kind: input, shape index: {}]
  %s3 = inlined_call_operand.vmem [shape: bf16[2,32,32], index: 3, kind: input, shape index: {}]
  %s4 = inlined_call_operand.vmem [shape: bf16[2,32,64], index: 4, kind: input, shape index: {}]
  %s5 = inlined_call_operand.vmem [shape: bf16[2,64,32], index: 5, kind: input, shape index: {}]
  %s6 = inlined_call_operand.vmem [shape: f32[2,1,96], index: 6, kind: input, shape index: {}]
  %s7 = inlined_call_operand.vmem [shape: f32[2,1,64], index: 7, kind: input, shape index: {}]
  %s8 = inlined_call_operand.vmem [shape: f32[2,6,32], index: 8, kind: input, shape index: {}]
  %s9 = inlined_call_operand.hbm [shape: f32[2,8,32], index: 9, kind: output, shape index: {}]
  %s10 = sld [smem:[#allocation0]]
  $region77: #{tpu_custom_call.1} parent=0
    _
  %s12 = ssub.s32 1, %s10
  %s13 = scalar_select 0, %s12, %s10
  $region1: #{tpu_custom_call.1} parent=0
    #allocation2 [shape = 'u8[8192]{0}', space=vmem, size = 0x2000, scoped, tag = 'input window, operand 0, single buffered']
    #allocation3 [shape = 's32[2]{0}', space=sflag, size = 0x8, scoped, tag = 'scoped memory for tpu_custom_call.1']
    #allocation4 [shape = 's32[2]{0}', space=sflag, size = 0x8, scoped, tag = 'scoped memory for tpu_custom_call.1']
    #allocation5 [shape = 'u8[8192]{0}', space=vmem, size = 0x2000, scoped, tag = 'output window, operand 0, single buffered']
    %14 = vsyncpa [#allocation3], 0
    %15 = vsyncpa [#allocation4], 0
    loop: start=0, step=1, limit=4
    $region2: #{tpu_custom_call.1} parent=1 // loop_pre_header
      _
    $region3: #{tpu_custom_call.1} parent=1 // loop_header
      %s17 = sphi 0, %s21
      %p18 = scmp.ge.s32.totalorder %s17, 4
      %s24 = sphi 0, %s36
      %s25 = sphi 0, %s32
      %s26 = sphi 0, %s24
      %s27 = sphi 0, %s25
      %s28 = sphi 0, %s26
      %s29 = sphi 0, %s27
      %s39 = sphi 0, %s41
      %s42 = sphi 0, %s39
      %s43 = sphi 0, %s42
      %s59 = sphi 0, %s43
      %s65 = sphi 0, %s67
      %s68 = sphi 0, %s65
      %s69 = sphi 0, %s68
      %s85 = sphi 0, %s69
      %s91 = sphi 0, %s93
      %s94 = sphi 0, %s91
      %s95 = sphi 0, %s94
      %s111 = sphi 0, %s95
      %s117 = sphi 0, %s119
      %s120 = sphi 0, %s117
      %s121 = sphi 0, %s120
      %s137 = sphi 0, %s121
      %s143 = sphi 0, %s145
      %s146 = sphi 0, %s143
      %s147 = sphi 0, %s146
      %s163 = sphi 0, %s147
      %s169 = sphi 0, %s171
      %s172 = sphi 0, %s169
      %s173 = sphi 0, %s172
      %s189 = sphi 0, %s173
      %s195 = sphi 0, %s197
      %s198 = sphi 0, %s195
      %s199 = sphi 0, %s198
      %s215 = sphi 0, %s199
      %s221 = sphi 0, %s223
      %s224 = sphi 0, %s221
      %s225 = sphi 0, %s224
      %s241 = sphi 0, %s225
      %s247 = sphi 0, %s249
      %s250 = sphi 0, %s247
      %s251 = sphi 0, %s250
      %s267 = sphi 0, %s251
      %s273 = sphi 0, %s275
      %s276 = sphi 0, %s273
      %s277 = sphi 0, %s276
      %s293 = sphi 0, %s277
    $region4: #{tpu_custom_call.1} parent=1 // loop_header_branch
      %20 = sbr.rel (%p18) target = $region8
    $region5: #{tpu_custom_call.1} parent=1 // loop_body
      %s22 = ssub.s32 %s17, 1
      %s23 = ssub.s32 %s17, 2
      %s30 = sadd.s32 1, %s25
      %p31 = scmp.ge.s32.totalorder %s30, 2
      %s32 = scalar_select %p31, 0, %s30
      %s33 = sadd.s32 1, %s24
      %s34 = scalar_select %p31, %s33, %s24
      %p35 = scmp.ge.s32.totalorder %s34, 1
      %s36 = scalar_select %p35, 0, %s34
      %s37 = ssub.s32 %s24, %s36
      %p38 = scmp.eq.s32.totalorder %s37, 0
      %s40 = sadd.s32 %s39, 1
      %s41 = scalar_select %p38, %s39, %s40
      %p44 = pneg %p38
      %p45 = scmp.eq.s32.totalorder %s17, 1
      %p46 = por %p44, %p45
      %p47 = scmp.ne.s32.totalorder %s39, %s42
      %p48 = scmp.eq.s32.totalorder %s17, 0
      %p49 = por %p47, %p48
      %p50 = scmp.ne.s32.totalorder %s39, %s42
      %p51 = scmp.eq.s32.totalorder %s22, 1
      %p52 = por %p50, %p51
      %p53 = scmp.ne.s32.totalorder %s42, %s43
      %p54 = scmp.eq.s32.totalorder %s22, 0
      %p55 = por %p53, %p54
      %p56 = scmp.ne.s32.totalorder %s42, %s43
      %p57 = scmp.eq.s32.totalorder %s23, 1
      %p58 = por %p56, %p57
      %p60 = scmp.ne.s32.totalorder %s43, %s59
      %p61 = scmp.eq.s32.totalorder %s23, 0
      %p62 = por %p60, %p61
      %s63 = ssub.s32 %s24, %s36
      %p64 = scmp.eq.s32.totalorder %s63, 0
      %s66 = sadd.s32 %s65, 1
      %s67 = scalar_select %p64, %s65, %s66
      %p70 = pneg %p64
      %p71 = scmp.eq.s32.totalorder %s17, 1
      %p72 = por %p70, %p71
      %p73 = scmp.ne.s32.totalorder %s65, %s68
      %p74 = scmp.eq.s32.totalorder %s17, 0
      %p75 = por %p73, %p74
      %p76 = scmp.ne.s32.totalorder %s65, %s68
      %p77 = scmp.eq.s32.totalorder %s22, 1
      %p78 = por %p76, %p77
      %p79 = scmp.ne.s32.totalorder %s68, %s69
      %p80 = scmp.eq.s32.totalorder %s22, 0
      %p81 = por %p79, %p80
      %p82 = scmp.ne.s32.totalorder %s68, %s69
      %p83 = scmp.eq.s32.totalorder %s23, 1
      %p84 = por %p82, %p83
      %p86 = scmp.ne.s32.totalorder %s69, %s85
      %p87 = scmp.eq.s32.totalorder %s23, 0
      %p88 = por %p86, %p87
      %s89 = ssub.s32 %s25, %s32
      %p90 = scmp.eq.s32.totalorder %s89, 0
      %s92 = sadd.s32 %s91, 1
      %s93 = scalar_select %p90, %s91, %s92
      %p96 = pneg %p90
      %p97 = scmp.eq.s32.totalorder %s17, 1
      %p98 = por %p96, %p97
      %p99 = scmp.ne.s32.totalorder %s91, %s94
      %p100 = scmp.eq.s32.totalorder %s17, 0
      %p101 = por %p99, %p100
      %p102 = scmp.ne.s32.totalorder %s91, %s94
      %p103 = scmp.eq.s32.totalorder %s22, 1
      %p104 = por %p102, %p103
      %p105 = scmp.ne.s32.totalorder %s94, %s95
      %p106 = scmp.eq.s32.totalorder %s22, 0
      %p107 = por %p105, %p106
      %p108 = scmp.ne.s32.totalorder %s94, %s95
      %p109 = scmp.eq.s32.totalorder %s23, 1
      %p110 = por %p108, %p109
      %p112 = scmp.ne.s32.totalorder %s95, %s111
      %p113 = scmp.eq.s32.totalorder %s23, 0
      %p114 = por %p112, %p113
      %s115 = ssub.s32 %s25, %s32
      %p116 = scmp.eq.s32.totalorder %s115, 0
      %s118 = sadd.s32 %s117, 1
      %s119 = scalar_select %p116, %s117, %s118
      %p122 = pneg %p116
      %p123 = scmp.eq.s32.totalorder %s17, 1
      %p124 = por %p122, %p123
      %p125 = scmp.ne.s32.totalorder %s117, %s120
      %p126 = scmp.eq.s32.totalorder %s17, 0
      %p127 = por %p125, %p126
      %p128 = scmp.ne.s32.totalorder %s117, %s120
      %p129 = scmp.eq.s32.totalorder %s22, 1
      %p130 = por %p128, %p129
      %p131 = scmp.ne.s32.totalorder %s120, %s121
      %p132 = scmp.eq.s32.totalorder %s22, 0
      %p133 = por %p131, %p132
      %p134 = scmp.ne.s32.totalorder %s120, %s121
      %p135 = scmp.eq.s32.totalorder %s23, 1
      %p136 = por %p134, %p135
      %p138 = scmp.ne.s32.totalorder %s121, %s137
      %p139 = scmp.eq.s32.totalorder %s23, 0
      %p140 = por %p138, %p139
      %s141 = ssub.s32 %s25, %s32
      %p142 = scmp.eq.s32.totalorder %s141, 0
      %s144 = sadd.s32 %s143, 1
      %s145 = scalar_select %p142, %s143, %s144
      %p148 = pneg %p142
      %p149 = scmp.eq.s32.totalorder %s17, 1
      %p150 = por %p148, %p149
      %p151 = scmp.ne.s32.totalorder %s143, %s146
      %p152 = scmp.eq.s32.totalorder %s17, 0
      %p153 = por %p151, %p152
      %p154 = scmp.ne.s32.totalorder %s143, %s146
      %p155 = scmp.eq.s32.totalorder %s22, 1
      %p156 = por %p154, %p155
      %p157 = scmp.ne.s32.totalorder %s146, %s147
      %p158 = scmp.eq.s32.totalorder %s22, 0
      %p159 = por %p157, %p158
      %p160 = scmp.ne.s32.totalorder %s146, %s147
      %p161 = scmp.eq.s32.totalorder %s23, 1
      %p162 = por %p160, %p161
      %p164 = scmp.ne.s32.totalorder %s147, %s163
      %p165 = scmp.eq.s32.totalorder %s23, 0
      %p166 = por %p164, %p165
      %s167 = ssub.s32 %s25, %s32
      %p168 = scmp.eq.s32.totalorder %s167, 0
      %s170 = sadd.s32 %s169, 1
      %s171 = scalar_select %p168, %s169, %s170
      %p174 = pneg %p168
      %p175 = scmp.eq.s32.totalorder %s17, 1
      %p176 = por %p174, %p175
      %p177 = scmp.ne.s32.totalorder %s169, %s172
      %p178 = scmp.eq.s32.totalorder %s17, 0
      %p179 = por %p177, %p178
      %p180 = scmp.ne.s32.totalorder %s169, %s172
      %p181 = scmp.eq.s32.totalorder %s22, 1
      %p182 = por %p180, %p181
      %p183 = scmp.ne.s32.totalorder %s172, %s173
      %p184 = scmp.eq.s32.totalorder %s22, 0
      %p185 = por %p183, %p184
      %p186 = scmp.ne.s32.totalorder %s172, %s173
      %p187 = scmp.eq.s32.totalorder %s23, 1
      %p188 = por %p186, %p187
      %p190 = scmp.ne.s32.totalorder %s173, %s189
      %p191 = scmp.eq.s32.totalorder %s23, 0
      %p192 = por %p190, %p191
      %s193 = ssub.s32 %s25, %s32
      %p194 = scmp.eq.s32.totalorder %s193, 0
      %s196 = sadd.s32 %s195, 1
      %s197 = scalar_select %p194, %s195, %s196
      %p200 = pneg %p194
      %p201 = scmp.eq.s32.totalorder %s17, 1
      %p202 = por %p200, %p201
      %p203 = scmp.ne.s32.totalorder %s195, %s198
      %p204 = scmp.eq.s32.totalorder %s17, 0
      %p205 = por %p203, %p204
      %p206 = scmp.ne.s32.totalorder %s195, %s198
      %p207 = scmp.eq.s32.totalorder %s22, 1
      %p208 = por %p206, %p207
      %p209 = scmp.ne.s32.totalorder %s198, %s199
      %p210 = scmp.eq.s32.totalorder %s22, 0
      %p211 = por %p209, %p210
      %p212 = scmp.ne.s32.totalorder %s198, %s199
      %p213 = scmp.eq.s32.totalorder %s23, 1
      %p214 = por %p212, %p213
      %p216 = scmp.ne.s32.totalorder %s199, %s215
      %p217 = scmp.eq.s32.totalorder %s23, 0
      %p218 = por %p216, %p217
      %s219 = ssub.s32 %s25, %s32
      %p220 = scmp.eq.s32.totalorder %s219, 0
      %s222 = sadd.s32 %s221, 1
      %s223 = scalar_select %p220, %s221, %s222
      %p226 = pneg %p220
      %p227 = scmp.eq.s32.totalorder %s17, 1
      %p228 = por %p226, %p227
      %p229 = scmp.ne.s32.totalorder %s221, %s224
      %p230 = scmp.eq.s32.totalorder %s17, 0
      %p231 = por %p229, %p230
      %p232 = scmp.ne.s32.totalorder %s221, %s224
      %p233 = scmp.eq.s32.totalorder %s22, 1
      %p234 = por %p232, %p233
      %p235 = scmp.ne.s32.totalorder %s224, %s225
      %p236 = scmp.eq.s32.totalorder %s22, 0
      %p237 = por %p235, %p236
      %p238 = scmp.ne.s32.totalorder %s224, %s225
      %p239 = scmp.eq.s32.totalorder %s23, 1
      %p240 = por %p238, %p239
      %p242 = scmp.ne.s32.totalorder %s225, %s241
      %p243 = scmp.eq.s32.totalorder %s23, 0
      %p244 = por %p242, %p243
      %s245 = ssub.s32 %s25, %s32
      %p246 = scmp.eq.s32.totalorder %s245, 0
      %s248 = sadd.s32 %s247, 1
      %s249 = scalar_select %p246, %s247, %s248
      %p252 = pneg %p246
      %p253 = scmp.eq.s32.totalorder %s17, 1
      %p254 = por %p252, %p253
      %p255 = scmp.ne.s32.totalorder %s247, %s250
      %p256 = scmp.eq.s32.totalorder %s17, 0
      %p257 = por %p255, %p256
      %p258 = scmp.ne.s32.totalorder %s247, %s250
      %p259 = scmp.eq.s32.totalorder %s22, 1
      %p260 = por %p258, %p259
      %p261 = scmp.ne.s32.totalorder %s250, %s251
      %p262 = scmp.eq.s32.totalorder %s22, 0
      %p263 = por %p261, %p262
      %p264 = scmp.ne.s32.totalorder %s250, %s251
      %p265 = scmp.eq.s32.totalorder %s23, 1
      %p266 = por %p264, %p265
      %p268 = scmp.ne.s32.totalorder %s251, %s267
      %p269 = scmp.eq.s32.totalorder %s23, 0
      %p270 = por %p268, %p269
      %s271 = ssub.s32 %s24, %s36
      %p272 = scmp.eq.s32.totalorder %s271, 0
      %s274 = sadd.s32 %s273, 1
      %s275 = scalar_select %p272, %s273, %s274
      %p278 = pneg %p272
      %p279 = scmp.eq.s32.totalorder %s17, 1
      %p280 = por %p278, %p279
      %p281 = scmp.ne.s32.totalorder %s273, %s276
      %p282 = scmp.eq.s32.totalorder %s17, 0
      %p283 = por %p281, %p282
      %p284 = scmp.ne.s32.totalorder %s273, %s276
      %p285 = scmp.eq.s32.totalorder %s22, 1
      %p286 = por %p284, %p285
      %p287 = scmp.ne.s32.totalorder %s276, %s277
      %p288 = scmp.eq.s32.totalorder %s22, 0
      %p289 = por %p287, %p288
      %p290 = scmp.ne.s32.totalorder %s276, %s277
      %p291 = scmp.eq.s32.totalorder %s23, 1
      %p292 = por %p290, %p291
      %p294 = scmp.ne.s32.totalorder %s277, %s293
      %p295 = scmp.eq.s32.totalorder %s23, 0
      %p296 = por %p294, %p295
      %p297 = scmp.le.s32.totalorder 1, %s17
      %p298 = scmp.lt.s32.totalorder %s17, 3
      %p299 = pnand %p297, %p298
      %p300 = pneg %p299
      // Predicated region
      $region9: #{tpu_custom_call.1} parent=5 // pred_check
        _
      $region10: #{tpu_custom_call.1} parent=5 // pred_check_branch
        %302 = sbr.rel (%p299) target = $region12
      $region11: #{tpu_custom_call.1} parent=5 // pred_region
        %s303 = ssub.s32 %s17, 1
        // Predicated region
        $region13: #{tpu_custom_call.1} parent=11 // pred_check
          %p304 = pneg %p55
        $region14: #{tpu_custom_call.1} parent=11 // pred_check_branch
          %306 = sbr.rel (%p304) target = $region16
        $region15: #{tpu_custom_call.1} parent=11 // pred_region
          %s307 = smul.u32 2, %s26
          %s309 = ssub.s32 256, 256
          %310 = vsyncadd [#allocation3], %s309
          %s311 = smul.addr %s307, 128
          %s312 = scalar_lea.hbm %s0, %s311
          %s313 = sshll.u32 [#allocation2], 4
          %s314 = int_to_ptr.vmem [resolvable:$true] %s313
          %319 = dma.hbm_to_vmem [thread:$0]  %s312, 256, %s314, [#allocation3], 128, 128, 8
        $region16: #{tpu_custom_call.1} parent=11 // pred_fallthru
          _
        // Predicated region
        $region17: #{tpu_custom_call.1} parent=11 // pred_check
          %p320 = pneg %p81
        $region18: #{tpu_custom_call.1} parent=11 // pred_check_branch
          %322 = sbr.rel (%p320) target = $region20
        $region19: #{tpu_custom_call.1} parent=11 // pred_region
          %s323 = smul.u32 2, %s26
          %p324 = scmp.lt.s32.totalorder %s323, 1
          %s325 = scalar_select %p324, %s323, 1
          %s326 = scalar_lea.vmem %s1, %s325
          %s327 = smul.u32 2, %s26
        $region20: #{tpu_custom_call.1} parent=11 // pred_fallthru
          _
      $region12: #{tpu_custom_call.1} parent=5 // pred_fallthru
        _
      %p328 = scmp.lt.s32.totalorder %s17, 2
      // Predicated region
      $region21: #{tpu_custom_call.1} parent=5 // pred_check
        %p329 = pneg %p328
      $region22: #{tpu_custom_call.1} parent=5 // pred_check_branch
        %331 = sbr.rel (%p329) target = $region24
      $region23: #{tpu_custom_call.1} parent=5 // pred_region
        // Predicated region
        $region25: #{tpu_custom_call.1} parent=23 // pred_check
          %p332 = pneg %p101
        $region26: #{tpu_custom_call.1} parent=23 // pred_check_branch
          %334 = sbr.rel (%p332) target = $region28
        $region27: #{tpu_custom_call.1} parent=23 // pred_region
          %p335 = scmp.lt.s32.totalorder %s25, 1
          %s336 = scalar_select %p335, %s25, 1
          %s337 = smul.addr %s336, 4
          %s338 = smul.addr %s337, 4
          %s339 = scalar_lea.vmem %s2, %s338
        $region28: #{tpu_custom_call.1} parent=23 // pred_fallthru
          _
        // Predicated region
        $region29: #{tpu_custom_call.1} parent=23 // pred_check
          %p340 = pneg %p127
        $region30: #{tpu_custom_call.1} parent=23 // pred_check_branch
          %342 = sbr.rel (%p340) target = $region32
        $region31: #{tpu_custom_call.1} parent=23 // pred_region
          %p343 = scmp.lt.s32.totalorder %s25, 1
          %s344 = scalar_select %p343, %s25, 1
          %s345 = smul.addr %s344, 4
          %s346 = smul.addr %s345, 4
          %s347 = scalar_lea.vmem %s3, %s346
        $region32: #{tpu_custom_call.1} parent=23 // pred_fallthru
          _
        // Predicated region
        $region33: #{tpu_custom_call.1} parent=23 // pred_check
          %p348 = pneg %p153
        $region34: #{tpu_custom_call.1} parent=23 // pred_check_branch
          %350 = sbr.rel (%p348) target = $region36
        $region35: #{tpu_custom_call.1} parent=23 // pred_region
          %p351 = scmp.lt.s32.totalorder %s25, 1
          %s352 = scalar_select %p351, %s25, 1
          %s353 = smul.addr %s352, 4
          %s354 = smul.addr %s353, 4
          %s355 = scalar_lea.vmem %s4, %s354
        $region36: #{tpu_custom_call.1} parent=23 // pred_fallthru
          _
        // Predicated region
        $region37: #{tpu_custom_call.1} parent=23 // pred_check
          %p356 = pneg %p179
        $region38: #{tpu_custom_call.1} parent=23 // pred_check_branch
          %358 = sbr.rel (%p356) target = $region40
        $region39: #{tpu_custom_call.1} parent=23 // pred_region
          %p359 = scmp.lt.s32.totalorder %s25, 1
          %s360 = scalar_select %p359, %s25, 1
          %s361 = smul.addr %s360, 8
          %s362 = smul.addr %s361, 4
          %s363 = scalar_lea.vmem %s5, %s362
        $region40: #{tpu_custom_call.1} parent=23 // pred_fallthru
          _
        // Predicated region
        $region41: #{tpu_custom_call.1} parent=23 // pred_check
          %p364 = pneg %p205
        $region42: #{tpu_custom_call.1} parent=23 // pred_check_branch
          %366 = sbr.rel (%p364) target = $region44
        $region43: #{tpu_custom_call.1} parent=23 // pred_region
          %p367 = scmp.lt.s32.totalorder %s25, 1
          %s368 = scalar_select %p367, %s25, 1
          %s369 = scalar_lea.vmem %s6, %s368
        $region44: #{tpu_custom_call.1} parent=23 // pred_fallthru
          _
        // Predicated region
        $region45: #{tpu_custom_call.1} parent=23 // pred_check
          %p370 = pneg %p231
        $region46: #{tpu_custom_call.1} parent=23 // pred_check_branch
          %372 = sbr.rel (%p370) target = $region48
        $region47: #{tpu_custom_call.1} parent=23 // pred_region
          %p373 = scmp.lt.s32.totalorder %s25, 1
          %s374 = scalar_select %p373, %s25, 1
          %s375 = scalar_lea.vmem %s7, %s374
        $region48: #{tpu_custom_call.1} parent=23 // pred_fallthru
          _
        // Predicated region
        $region49: #{tpu_custom_call.1} parent=23 // pred_check
          %p376 = pneg %p257
        $region50: #{tpu_custom_call.1} parent=23 // pred_check_branch
          %378 = sbr.rel (%p376) target = $region52
        $region51: #{tpu_custom_call.1} parent=23 // pred_region
          %p379 = scmp.lt.s32.totalorder %s25, 1
          %s380 = scalar_select %p379, %s25, 1
          %s381 = smul.addr %s380, 8
          %s382 = scalar_lea.vmem %s8, %s381
        $region52: #{tpu_custom_call.1} parent=23 // pred_fallthru
          _
      $region24: #{tpu_custom_call.1} parent=5 // pred_fallthru
        _
      %p383 = scmp.le.s32.totalorder 1, %s17
      %p384 = scmp.lt.s32.totalorder %s17, 3
      %p385 = pnand %p383, %p384
      %p386 = pneg %p385
      // Predicated region
      $region53: #{tpu_custom_call.1} parent=5 // pred_check
        _
      $region54: #{tpu_custom_call.1} parent=5 // pred_check_branch
        %388 = sbr.rel (%p385) target = $region56
      $region55: #{tpu_custom_call.1} parent=5 // pred_region
        %s389 = ssub.s32 %s17, 1
        // Predicated region
        $region57: #{tpu_custom_call.1} parent=55 // pred_check
          %p390 = pneg %p55
        $region58: #{tpu_custom_call.1} parent=55 // pred_check_branch
          %392 = sbr.rel (%p390) target = $region60
        $region59: #{tpu_custom_call.1} parent=55 // pred_region
          %393 = dma.done [#allocation3], 256
        $region60: #{tpu_custom_call.1} parent=55 // pred_fallthru
          _
        %p394 = pneg %p55
        %p395 = pneg %p52
        %s396 = smul.u32 2, %s26
        %p397 = scmp.lt.s32.totalorder %s396, 1
        %s398 = scalar_select %p397, %s396, 1
        %s399 = scalar_lea.vmem %s1, %s398
        %p400 = pneg %p81
        %p401 = pneg %p78
        %p402 = scmp.lt.s32.totalorder %s27, 1
        %s403 = scalar_select %p402, %s27, 1
        %s404 = smul.addr %s403, 4
        %s405 = smul.addr %s404, 4
        %s406 = scalar_lea.vmem %s2, %s405
        %p407 = pneg %p107
        %p408 = pneg %p104
        %p409 = scmp.lt.s32.totalorder %s27, 1
        %s410 = scalar_select %p409, %s27, 1
        %s411 = smul.addr %s410, 4
        %s412 = smul.addr %s411, 4
        %s413 = scalar_lea.vmem %s3, %s412
        %p414 = pneg %p133
        %p415 = pneg %p130
        %p416 = scmp.lt.s32.totalorder %s27, 1
        %s417 = scalar_select %p416, %s27, 1
        %s418 = smul.addr %s417, 4
        %s419 = smul.addr %s418, 4
        %s420 = scalar_lea.vmem %s4, %s419
        %p421 = pneg %p159
        %p422 = pneg %p156
        %p423 = scmp.lt.s32.totalorder %s27, 1
        %s424 = scalar_select %p423, %s27, 1
        %s425 = smul.addr %s424, 8
        %s426 = smul.addr %s425, 4
        %s427 = scalar_lea.vmem %s5, %s426
        %p428 = pneg %p185
        %p429 = pneg %p182
        %p430 = scmp.lt.s32.totalorder %s27, 1
        %s431 = scalar_select %p430, %s27, 1
        %s432 = scalar_lea.vmem %s6, %s431
        %p433 = pneg %p211
        %p434 = pneg %p208
        %p435 = scmp.lt.s32.totalorder %s27, 1
        %s436 = scalar_select %p435, %s27, 1
        %s437 = scalar_lea.vmem %s7, %s436
        %p438 = pneg %p237
        %p439 = pneg %p234
        %p440 = scmp.lt.s32.totalorder %s27, 1
        %s441 = scalar_select %p440, %s27, 1
        %s442 = smul.addr %s441, 8
        %s443 = scalar_lea.vmem %s8, %s442
        %p444 = pneg %p263
        %p445 = pneg %p260
        %p446 = pneg %p289
        %p447 = pneg %p286
        %s448 = smul.u32 2, %s26
        %s449 = smul.u32 2, %s26
        %p450 = scmp.lt.s32.totalorder %s449, 1
        %s451 = scalar_select %p450, %s449, 1
        %s452 = scalar_lea.vmem %s1, %s451
        %s453 = smul.u32 2, %s26
        %p454 = scmp.lt.s32.totalorder %s27, 1
        %s455 = scalar_select %p454, %s27, 1
        %s456 = smul.addr %s455, 4
        %s457 = smul.addr %s456, 4
        %s458 = scalar_lea.vmem %s2, %s457
        %p459 = scmp.lt.s32.totalorder %s27, 1
        %s460 = scalar_select %p459, %s27, 1
        %s461 = smul.addr %s460, 4
        %s462 = smul.addr %s461, 4
        %s463 = scalar_lea.vmem %s3, %s462
        %p464 = scmp.lt.s32.totalorder %s27, 1
        %s465 = scalar_select %p464, %s27, 1
        %s466 = smul.addr %s465, 4
        %s467 = smul.addr %s466, 4
        %s468 = scalar_lea.vmem %s4, %s467
        %p469 = scmp.lt.s32.totalorder %s27, 1
        %s470 = scalar_select %p469, %s27, 1
        %s471 = smul.addr %s470, 8
        %s472 = smul.addr %s471, 4
        %s473 = scalar_lea.vmem %s5, %s472
        %p474 = scmp.lt.s32.totalorder %s27, 1
        %s475 = scalar_select %p474, %s27, 1
        %s476 = scalar_lea.vmem %s6, %s475
        %p477 = scmp.lt.s32.totalorder %s27, 1
        %s478 = scalar_select %p477, %s27, 1
        %s479 = scalar_lea.vmem %s7, %s478
        %p480 = scmp.lt.s32.totalorder %s27, 1
        %s481 = scalar_select %p480, %s27, 1
        %s482 = smul.addr %s481, 8
        %s483 = scalar_lea.vmem %s8, %s482
        %s484 = smul.u32 2, %s26
        %p486 = scmp.eq.s32.totalorder %s27, 0
        // Predicated region
        $region61: #{tpu_custom_call.1} parent=55 // pred_check
          %p487 = pneg %p486
        $region62: #{tpu_custom_call.1} parent=55 // pred_check_branch
          %489 = sbr.rel (%p487) target = $region64
        $region63: #{tpu_custom_call.1} parent=55 // pred_region
          %v490 = vld [vmem:[#allocation2] sm:$0xff]
          %v491 = vld [vmem:[#allocation2 + $0x8] sm:$0xff]
          %vm492 = vcmask 261120
          %493 = vst.msk [vmem:[#allocation5] sm:$0xff] %vm492, %v490
          %494 = vst.msk [vmem:[#allocation5 + $0x8] sm:$0xff] %vm492, %v491
        $region64: #{tpu_custom_call.1} parent=55 // pred_fallthru
          _
        %v495 = vld [vmem:[#allocation5] sm:$0xff]
        %v496 = vld [vmem:[#allocation5 + $0x8] sm:$0xff]
        %v497 = vld [vmem:[%s452] sm:$0x1]
        %v498 = vld [vmem:[%s452 + $0x1] sm:$0x1]
        %v499 = vld [vmem:[%s483] sm:$0x3f]
        %v500 = vld [vmem:[%s476] sm:$0x1]
        %v501 = vld [vmem:[%s479] sm:$0x1]
        %v502 = vpack.c.bf16 %v496, %v495
        %v503 = vld [vmem:[%s458] sm:$0xf]
        %v504 = vld [vmem:[%s458 + $0x4] sm:$0xf]
        %v505 = vld [vmem:[%s458 + $0x8] sm:$0xf]
        %v506 = vld [vmem:[%s458 + $0xc] sm:$0xf]
        %v508 = vlaneseq
        %v509 = vshrl.u32 %v508, 7
        %v510 = vsub.s32 0, %v509
        %v511 = vrot.slane %v500, %v510
        %v517 = vunpack.c.l.b16 %v503
        %v518 = vunpack.c.l.b16 %v504
        %v519 = vunpack.c.l.b16 %v505
        %v520 = vunpack.c.l.b16 %v506
        %v521 = vpack.c.b16 %v518, %v517
        %v522 = vpack.c.b16 %v520, %v519
        %vm525 = vcmask 261120
        %v527 = vsel %vm525, %v502, 0
        %529 = vmatprep.subr.bf16.mxu0 0
        %530 = vmatpush1.bf16.msra.mxu0 0
        %531 = vmatprep.subr.bf16.mxu0 0
        %532 = vmatpush1.bf16.msra.mxu0 0
        %533 = vmatprep.subr.bf16.mxu0 0
        %534 = vmatpush1.bf16.msra.mxu0 0
        %535 = vmatprep.subr.bf16.mxu0 0
        %536 = vmatpush1.bf16.msra.mxu0 0
        %537 = vmatprep.subr.bf16.mxu0 0
        %538 = vmatpush1.bf16.msra.mxu0 0
        %539 = vmatprep.subr.bf16.mxu0 0
        %540 = vmatpush1.bf16.msra.mxu0 0
        %541 = vmatprep.subr.bf16.mxu0 0
        %542 = vmatpush1.bf16.msra.mxu0 %v522
        %543 = vmatprep.subr.bf16.mxu0 0
        %544 = vmatpush1.bf16.msra.mxu0 %v521
        %545 = vmatprep.subr.bf16.mxu0 0
        %546 = vmatpush2.bf16.msra.mxu0 0
        %547 = vmatprep.subr.bf16.mxu0 0
        %548 = vmatpush2.bf16.msra.mxu0 0
        %549 = vmatprep.subr.bf16.mxu0 0
        %550 = vmatpush2.bf16.msra.mxu0 0
        %551 = vmatprep.subr.bf16.mxu0 0
        %552 = vmatpush2.bf16.msra.mxu0 0
        %553 = vmatprep.subr.bf16.mxu0 0
        %554 = vmatpush2.bf16.msra.mxu0 0
        %555 = vmatprep.subr.bf16.mxu0 0
        %556 = vmatpush2.bf16.msra.mxu0 0
        %557 = vmatprep.subr.bf16.mxu0 0
        %558 = vmatpush2.bf16.msra.mxu0 0
        %559 = vmatprep.subr.bf16.mxu0 0
        %560 = vmatpush2.bf16.msra.mxu0 0
        %561 = vmatprep.mubr.bf16.mxu0 0
        %562 = vmatmul.mubr.bf16.gmra.mxu0 %v527
        %v563 = vpop.f32.mrf.mxu0
        %v564 = vadd.f32 %v511, %v563
        %v565 = vpop.f32.mrf.mxu0
        %v566 = vpop.f32.mrf.mxu0
        %v567 = vadd.f32 %v511, %v566
        %v568 = vpop.f32.mrf.mxu0
        %569 = vdwg.mxu0
        %572 = vrot.lane.b32.xlu0 %v564, 120
        %v573 = vpop.permute.xlu0 %572
        %574 = vrot.lane.b32.xlu0 %v567, 120
        %v575 = vpop.permute.xlu0 %574
        %578 = vrot.lane.b32.xlu0 %v564, 112
        %v579 = vpop.permute.xlu0 %578
        %580 = vrot.lane.b32.xlu0 %v567, 112
        %v581 = vpop.permute.xlu0 %580
        %584 = vrot.lane.b32.xlu0 %v564, 104
        %v585 = vpop.permute.xlu0 %584
        %586 = vrot.lane.b32.xlu0 %v567, 104
        %v587 = vpop.permute.xlu0 %586
        %v590 = vcombine.low %v564, %v579
        %v591 = vcombine.high %v564, %v579
        %v593 = vunpack.c.l.s4 1983009808
        %v594 = vunpack.c.0.s8 %v593
        %v595 = vlaneseq
        %v596 = vshrl.u32 %v595, 7
        %v597 = vsub.s32 %v594, %v596
        %v598 = vrot.slane %v590, %v597
        %v600 = vunpack.c.l.s4 1983009808
        %v601 = vunpack.c.0.s8 %v600
        %v602 = vlaneseq
        %v603 = vshrl.u32 %v602, 7
        %v604 = vsub.s32 %v601, %v603
        %v605 = vrot.slane %v591, %v604
        %v606 = vcombine.low %v573, %v585
        %v607 = vcombine.high %v573, %v585
        %v609 = vunpack.c.l.s4 1983009808
        %v610 = vunpack.c.0.s8 %v609
        %v611 = vlaneseq
        %v612 = vshrl.u32 %v611, 7
        %v613 = vsub.s32 %v610, %v612
        %v614 = vrot.slane %v606, %v613
        %v616 = vunpack.c.l.s4 1983009808
        %v617 = vunpack.c.0.s8 %v616
        %v618 = vlaneseq
        %v619 = vshrl.u32 %v618, 7
        %v620 = vsub.s32 %v617, %v619
        %v621 = vrot.slane %v607, %v620
        %v622 = vcombine.low %v598, %v614
        %v623 = vcombine.high %v598, %v614
        %v625 = vunpack.c.l.s4 1934713408
        %v626 = vunpack.c.0.s8 %v625
        %v627 = vlaneseq
        %v628 = vshrl.u32 %v627, 7
        %v629 = vsub.s32 %v626, %v628
        %v630 = vrot.slane %v622, %v629
        %v632 = vunpack.c.l.s4 1934713408
        %v633 = vunpack.c.0.s8 %v632
        %v634 = vlaneseq
        %v635 = vshrl.u32 %v634, 7
        %v636 = vsub.s32 %v633, %v635
        %v637 = vrot.slane %v623, %v636
        %v638 = vcombine.low %v605, %v621
        %v639 = vcombine.high %v605, %v621
        %v641 = vunpack.c.l.s4 1934713408
        %v642 = vunpack.c.0.s8 %v641
        %v643 = vlaneseq
        %v644 = vshrl.u32 %v643, 7
        %v645 = vsub.s32 %v642, %v644
        %v646 = vrot.slane %v638, %v645
        %v648 = vunpack.c.l.s4 1934713408
        %v649 = vunpack.c.0.s8 %v648
        %v650 = vlaneseq
        %v651 = vshrl.u32 %v650, 7
        %v652 = vsub.s32 %v649, %v651
        %v653 = vrot.slane %v639, %v652
        %v654 = vcombine.high %v630, 0.0
        %v655 = vcombine.high %v637, 0.0
        %v656 = vcombine.high %v646, 0.0
        %v657 = vcombine.high %v653, 0.0
        %v658 = vcombine.low %v567, %v581
        %v659 = vcombine.high %v567, %v581
        %v661 = vunpack.c.l.s4 1983009808
        %v662 = vunpack.c.0.s8 %v661
        %v663 = vlaneseq
        %v664 = vshrl.u32 %v663, 7
        %v665 = vsub.s32 %v662, %v664
        %v666 = vrot.slane %v658, %v665
        %v668 = vunpack.c.l.s4 1983009808
        %v669 = vunpack.c.0.s8 %v668
        %v670 = vlaneseq
        %v671 = vshrl.u32 %v670, 7
        %v672 = vsub.s32 %v669, %v671
        %v673 = vrot.slane %v659, %v672
        %v674 = vcombine.low %v575, %v587
        %v675 = vcombine.high %v575, %v587
        %v677 = vunpack.c.l.s4 1983009808
        %v678 = vunpack.c.0.s8 %v677
        %v679 = vlaneseq
        %v680 = vshrl.u32 %v679, 7
        %v681 = vsub.s32 %v678, %v680
        %v682 = vrot.slane %v674, %v681
        %v684 = vunpack.c.l.s4 1983009808
        %v685 = vunpack.c.0.s8 %v684
        %v686 = vlaneseq
        %v687 = vshrl.u32 %v686, 7
        %v688 = vsub.s32 %v685, %v687
        %v689 = vrot.slane %v675, %v688
        %v690 = vcombine.low %v666, %v682
        %v691 = vcombine.high %v666, %v682
        %v693 = vunpack.c.l.s4 1934713408
        %v694 = vunpack.c.0.s8 %v693
        %v695 = vlaneseq
        %v696 = vshrl.u32 %v695, 7
        %v697 = vsub.s32 %v694, %v696
        %v698 = vrot.slane %v690, %v697
        %v700 = vunpack.c.l.s4 1934713408
        %v701 = vunpack.c.0.s8 %v700
        %v702 = vlaneseq
        %v703 = vshrl.u32 %v702, 7
        %v704 = vsub.s32 %v701, %v703
        %v705 = vrot.slane %v691, %v704
        %v706 = vcombine.low %v673, %v689
        %v707 = vcombine.high %v673, %v689
        %v709 = vunpack.c.l.s4 1934713408
        %v710 = vunpack.c.0.s8 %v709
        %v711 = vlaneseq
        %v712 = vshrl.u32 %v711, 7
        %v713 = vsub.s32 %v710, %v712
        %v714 = vrot.slane %v706, %v713
        %v716 = vunpack.c.l.s4 1934713408
        %v717 = vunpack.c.0.s8 %v716
        %v718 = vlaneseq
        %v719 = vshrl.u32 %v718, 7
        %v720 = vsub.s32 %v717, %v719
        %v721 = vrot.slane %v707, %v720
        %v722 = vcombine.high %v698, 0.0
        %v723 = vcombine.high %v705, 0.0
        %v724 = vcombine.high %v714, 0.0
        %v725 = vcombine.high %v721, 0.0
        %v726 = vcombine.low %v630, %v637
        %v728 = vunpack.c.l.s4 1983009808
        %v729 = vunpack.c.0.s8 %v728
        %v730 = vlaneseq
        %v731 = vshrl.u32 %v730, 7
        %v732 = vsub.s32 %v729, %v731
        %v733 = vrot.slane %v726, %v732
        %v734 = vcombine.low %v654, %v655
        %v736 = vunpack.c.l.s4 1983009808
        %v737 = vunpack.c.0.s8 %v736
        %v738 = vlaneseq
        %v739 = vshrl.u32 %v738, 7
        %v740 = vsub.s32 %v737, %v739
        %v741 = vrot.slane %v734, %v740
        %v742 = vcombine.low %v646, %v653
        %v744 = vunpack.c.l.s4 1983009808
        %v745 = vunpack.c.0.s8 %v744
        %v746 = vlaneseq
        %v747 = vshrl.u32 %v746, 7
        %v748 = vsub.s32 %v745, %v747
        %v749 = vrot.slane %v742, %v748
        %v750 = vcombine.low %v656, %v657
        %v752 = vunpack.c.l.s4 1983009808
        %v753 = vunpack.c.0.s8 %v752
        %v754 = vlaneseq
        %v755 = vshrl.u32 %v754, 7
        %v756 = vsub.s32 %v753, %v755
        %v757 = vrot.slane %v750, %v756
        %v758 = vcombine.low %v733, %v741
        %v759 = vcombine.high %v733, %v741
        %v761 = vunpack.c.l.s4 1934713408
        %v762 = vunpack.c.0.s8 %v761
        %v763 = vlaneseq
        %v764 = vshrl.u32 %v763, 7
        %v765 = vsub.s32 %v762, %v764
        %v766 = vrot.slane %v758, %v765
        %v768 = vunpack.c.l.s4 1934713408
        %v769 = vunpack.c.0.s8 %v768
        %v770 = vlaneseq
        %v771 = vshrl.u32 %v770, 7
        %v772 = vsub.s32 %v769, %v771
        %v773 = vrot.slane %v759, %v772
        %v774 = vcombine.low %v749, %v757
        %v775 = vcombine.high %v749, %v757
        %v777 = vunpack.c.l.s4 1934713408
        %v778 = vunpack.c.0.s8 %v777
        %v779 = vlaneseq
        %v780 = vshrl.u32 %v779, 7
        %v781 = vsub.s32 %v778, %v780
        %v782 = vrot.slane %v774, %v781
        %v784 = vunpack.c.l.s4 1934713408
        %v785 = vunpack.c.0.s8 %v784
        %v786 = vlaneseq
        %v787 = vshrl.u32 %v786, 7
        %v788 = vsub.s32 %v785, %v787
        %v789 = vrot.slane %v775, %v788
        %v790 = vcombine.low %v766, %v782
        %v791 = vcombine.high %v766, %v782
        %v792 = vcombine.low %v773, %v789
        %v793 = vcombine.high %v773, %v789
        %v794 = vcombine.low %v698, %v705
        %v796 = vunpack.c.l.s4 1983009808
        %v797 = vunpack.c.0.s8 %v796
        %v798 = vlaneseq
        %v799 = vshrl.u32 %v798, 7
        %v800 = vsub.s32 %v797, %v799
        %v801 = vrot.slane %v794, %v800
        %v802 = vcombine.low %v722, %v723
        %v804 = vunpack.c.l.s4 1983009808
        %v805 = vunpack.c.0.s8 %v804
        %v806 = vlaneseq
        %v807 = vshrl.u32 %v806, 7
        %v808 = vsub.s32 %v805, %v807
        %v809 = vrot.slane %v802, %v808
        %v810 = vcombine.low %v714, %v721
        %v812 = vunpack.c.l.s4 1983009808
        %v813 = vunpack.c.0.s8 %v812
        %v814 = vlaneseq
        %v815 = vshrl.u32 %v814, 7
        %v816 = vsub.s32 %v813, %v815
        %v817 = vrot.slane %v810, %v816
        %v818 = vcombine.low %v724, %v725
        %v820 = vunpack.c.l.s4 1983009808
        %v821 = vunpack.c.0.s8 %v820
        %v822 = vlaneseq
        %v823 = vshrl.u32 %v822, 7
        %v824 = vsub.s32 %v821, %v823
        %v825 = vrot.slane %v818, %v824
        %v826 = vcombine.low %v801, %v809
        %v827 = vcombine.high %v801, %v809
        %v829 = vunpack.c.l.s4 1934713408
        %v830 = vunpack.c.0.s8 %v829
        %v831 = vlaneseq
        %v832 = vshrl.u32 %v831, 7
        %v833 = vsub.s32 %v830, %v832
        %v834 = vrot.slane %v826, %v833
        %v836 = vunpack.c.l.s4 1934713408
        %v837 = vunpack.c.0.s8 %v836
        %v838 = vlaneseq
        %v839 = vshrl.u32 %v838, 7
        %v840 = vsub.s32 %v837, %v839
        %v841 = vrot.slane %v827, %v840
        %v842 = vcombine.low %v817, %v825
        %v843 = vcombine.high %v817, %v825
        %v845 = vunpack.c.l.s4 1934713408
        %v846 = vunpack.c.0.s8 %v845
        %v847 = vlaneseq
        %v848 = vshrl.u32 %v847, 7
        %v849 = vsub.s32 %v846, %v848
        %v850 = vrot.slane %v842, %v849
        %v852 = vunpack.c.l.s4 1934713408
        %v853 = vunpack.c.0.s8 %v852
        %v854 = vlaneseq
        %v855 = vshrl.u32 %v854, 7
        %v856 = vsub.s32 %v853, %v855
        %v857 = vrot.slane %v843, %v856
        %v858 = vcombine.low %v834, %v850
        %v859 = vcombine.high %v834, %v850
        %v860 = vcombine.low %v841, %v857
        %v861 = vcombine.high %v841, %v857
        %862 = vrot.lane.b32.xlu0 %v564, 96
        %v863 = vpop.permute.xlu0 %862
        %864 = vrot.lane.b32.xlu0 %v567, 96
        %v865 = vpop.permute.xlu0 %864
        %866 = vrot.lane.b32.xlu0 %v573, 96
        %v867 = vpop.permute.xlu0 %866
        %868 = vrot.lane.b32.xlu0 %v575, 96
        %v869 = vpop.permute.xlu0 %868
        %870 = vrot.lane.b32.xlu0 %v579, 96
        %v871 = vpop.permute.xlu0 %870
        %872 = vrot.lane.b32.xlu0 %v581, 96
        %v873 = vpop.permute.xlu0 %872
        %874 = vrot.lane.b32.xlu0 %v585, 96
        %v875 = vpop.permute.xlu0 %874
        %876 = vrot.lane.b32.xlu0 %v587, 96
        %v877 = vpop.permute.xlu0 %876
        %v886 = vcombine.low %v863, %v871
        %v887 = vcombine.high %v863, %v871
        %v889 = vunpack.c.l.s4 1983009808
        %v890 = vunpack.c.0.s8 %v889
        %v891 = vlaneseq
        %v892 = vshrl.u32 %v891, 7
        %v893 = vsub.s32 %v890, %v892
        %v894 = vrot.slane %v886, %v893
        %v896 = vunpack.c.l.s4 1983009808
        %v897 = vunpack.c.0.s8 %v896
        %v898 = vlaneseq
        %v899 = vshrl.u32 %v898, 7
        %v900 = vsub.s32 %v897, %v899
        %v901 = vrot.slane %v887, %v900
        %v902 = vcombine.low %v867, %v875
        %v903 = vcombine.high %v867, %v875
        %v905 = vunpack.c.l.s4 1983009808
        %v906 = vunpack.c.0.s8 %v905
        %v907 = vlaneseq
        %v908 = vshrl.u32 %v907, 7
        %v909 = vsub.s32 %v906, %v908
        %v910 = vrot.slane %v902, %v909
        %v912 = vunpack.c.l.s4 1983009808
        %v913 = vunpack.c.0.s8 %v912
        %v914 = vlaneseq
        %v915 = vshrl.u32 %v914, 7
        %v916 = vsub.s32 %v913, %v915
        %v917 = vrot.slane %v903, %v916
        %v918 = vcombine.low %v894, %v910
        %v919 = vcombine.high %v894, %v910
        %v921 = vunpack.c.l.s4 1934713408
        %v922 = vunpack.c.0.s8 %v921
        %v923 = vlaneseq
        %v924 = vshrl.u32 %v923, 7
        %v925 = vsub.s32 %v922, %v924
        %v926 = vrot.slane %v918, %v925
        %v928 = vunpack.c.l.s4 1934713408
        %v929 = vunpack.c.0.s8 %v928
        %v930 = vlaneseq
        %v931 = vshrl.u32 %v930, 7
        %v932 = vsub.s32 %v929, %v931
        %v933 = vrot.slane %v919, %v932
        %v934 = vcombine.low %v901, %v917
        %v935 = vcombine.high %v901, %v917
        %v937 = vunpack.c.l.s4 1934713408
        %v938 = vunpack.c.0.s8 %v937
        %v939 = vlaneseq
        %v940 = vshrl.u32 %v939, 7
        %v941 = vsub.s32 %v938, %v940
        %v942 = vrot.slane %v934, %v941
        %v944 = vunpack.c.l.s4 1934713408
        %v945 = vunpack.c.0.s8 %v944
        %v946 = vlaneseq
        %v947 = vshrl.u32 %v946, 7
        %v948 = vsub.s32 %v945, %v947
        %v949 = vrot.slane %v935, %v948
        %v950 = vcombine.high %v926, 0.0
        %v951 = vcombine.high %v933, 0.0
        %v952 = vcombine.high %v942, 0.0
        %v953 = vcombine.high %v949, 0.0
        %v954 = vcombine.low %v865, %v873
        %v955 = vcombine.high %v865, %v873
        %v957 = vunpack.c.l.s4 1983009808
        %v958 = vunpack.c.0.s8 %v957
        %v959 = vlaneseq
        %v960 = vshrl.u32 %v959, 7
        %v961 = vsub.s32 %v958, %v960
        %v962 = vrot.slane %v954, %v961
        %v964 = vunpack.c.l.s4 1983009808
        %v965 = vunpack.c.0.s8 %v964
        %v966 = vlaneseq
        %v967 = vshrl.u32 %v966, 7
        %v968 = vsub.s32 %v965, %v967
        %v969 = vrot.slane %v955, %v968
        %v970 = vcombine.low %v869, %v877
        %v971 = vcombine.high %v869, %v877
        %v973 = vunpack.c.l.s4 1983009808
        %v974 = vunpack.c.0.s8 %v973
        %v975 = vlaneseq
        %v976 = vshrl.u32 %v975, 7
        %v977 = vsub.s32 %v974, %v976
        %v978 = vrot.slane %v970, %v977
        %v980 = vunpack.c.l.s4 1983009808
        %v981 = vunpack.c.0.s8 %v980
        %v982 = vlaneseq
        %v983 = vshrl.u32 %v982, 7
        %v984 = vsub.s32 %v981, %v983
        %v985 = vrot.slane %v971, %v984
        %v986 = vcombine.low %v962, %v978
        %v987 = vcombine.high %v962, %v978
        %v989 = vunpack.c.l.s4 1934713408
        %v990 = vunpack.c.0.s8 %v989
        %v991 = vlaneseq
        %v992 = vshrl.u32 %v991, 7
        %v993 = vsub.s32 %v990, %v992
        %v994 = vrot.slane %v986, %v993
        %v996 = vunpack.c.l.s4 1934713408
        %v997 = vunpack.c.0.s8 %v996
        %v998 = vlaneseq
        %v999 = vshrl.u32 %v998, 7
        %v1000 = vsub.s32 %v997, %v999
        %v1001 = vrot.slane %v987, %v1000
        %v1002 = vcombine.low %v969, %v985
        %v1003 = vcombine.high %v969, %v985
        %v1005 = vunpack.c.l.s4 1934713408
        %v1006 = vunpack.c.0.s8 %v1005
        %v1007 = vlaneseq
        %v1008 = vshrl.u32 %v1007, 7
        %v1009 = vsub.s32 %v1006, %v1008
        %v1010 = vrot.slane %v1002, %v1009
        %v1012 = vunpack.c.l.s4 1934713408
        %v1013 = vunpack.c.0.s8 %v1012
        %v1014 = vlaneseq
        %v1015 = vshrl.u32 %v1014, 7
        %v1016 = vsub.s32 %v1013, %v1015
        %v1017 = vrot.slane %v1003, %v1016
        %v1018 = vcombine.high %v994, 0.0
        %v1019 = vcombine.high %v1001, 0.0
        %v1020 = vcombine.high %v1010, 0.0
        %v1021 = vcombine.high %v1017, 0.0
        %v1022 = vcombine.low %v926, %v933
        %v1024 = vunpack.c.l.s4 1983009808
        %v1025 = vunpack.c.0.s8 %v1024
        %v1026 = vlaneseq
        %v1027 = vshrl.u32 %v1026, 7
        %v1028 = vsub.s32 %v1025, %v1027
        %v1029 = vrot.slane %v1022, %v1028
        %v1030 = vcombine.low %v950, %v951
        %v1032 = vunpack.c.l.s4 1983009808
        %v1033 = vunpack.c.0.s8 %v1032
        %v1034 = vlaneseq
        %v1035 = vshrl.u32 %v1034, 7
        %v1036 = vsub.s32 %v1033, %v1035
        %v1037 = vrot.slane %v1030, %v1036
        %v1038 = vcombine.low %v942, %v949
        %v1040 = vunpack.c.l.s4 1983009808
        %v1041 = vunpack.c.0.s8 %v1040
        %v1042 = vlaneseq
        %v1043 = vshrl.u32 %v1042, 7
        %v1044 = vsub.s32 %v1041, %v1043
        %v1045 = vrot.slane %v1038, %v1044
        %v1046 = vcombine.low %v952, %v953
        %v1048 = vunpack.c.l.s4 1983009808
        %v1049 = vunpack.c.0.s8 %v1048
        %v1050 = vlaneseq
        %v1051 = vshrl.u32 %v1050, 7
        %v1052 = vsub.s32 %v1049, %v1051
        %v1053 = vrot.slane %v1046, %v1052
        %v1054 = vcombine.low %v1029, %v1037
        %v1055 = vcombine.high %v1029, %v1037
        %v1057 = vunpack.c.l.s4 1934713408
        %v1058 = vunpack.c.0.s8 %v1057
        %v1059 = vlaneseq
        %v1060 = vshrl.u32 %v1059, 7
        %v1061 = vsub.s32 %v1058, %v1060
        %v1062 = vrot.slane %v1054, %v1061
        %v1064 = vunpack.c.l.s4 1934713408
        %v1065 = vunpack.c.0.s8 %v1064
        %v1066 = vlaneseq
        %v1067 = vshrl.u32 %v1066, 7
        %v1068 = vsub.s32 %v1065, %v1067
        %v1069 = vrot.slane %v1055, %v1068
        %v1070 = vcombine.low %v1045, %v1053
        %v1071 = vcombine.high %v1045, %v1053
        %v1073 = vunpack.c.l.s4 1934713408
        %v1074 = vunpack.c.0.s8 %v1073
        %v1075 = vlaneseq
        %v1076 = vshrl.u32 %v1075, 7
        %v1077 = vsub.s32 %v1074, %v1076
        %v1078 = vrot.slane %v1070, %v1077
        %v1080 = vunpack.c.l.s4 1934713408
        %v1081 = vunpack.c.0.s8 %v1080
        %v1082 = vlaneseq
        %v1083 = vshrl.u32 %v1082, 7
        %v1084 = vsub.s32 %v1081, %v1083
        %v1085 = vrot.slane %v1071, %v1084
        %v1086 = vcombine.low %v1062, %v1078
        %v1087 = vcombine.high %v1062, %v1078
        %v1088 = vcombine.low %v1069, %v1085
        %v1089 = vcombine.high %v1069, %v1085
        %v1090 = vcombine.low %v994, %v1001
        %v1092 = vunpack.c.l.s4 1983009808
        %v1093 = vunpack.c.0.s8 %v1092
        %v1094 = vlaneseq
        %v1095 = vshrl.u32 %v1094, 7
        %v1096 = vsub.s32 %v1093, %v1095
        %v1097 = vrot.slane %v1090, %v1096
        %v1098 = vcombine.low %v1018, %v1019
        %v1100 = vunpack.c.l.s4 1983009808
        %v1101 = vunpack.c.0.s8 %v1100
        %v1102 = vlaneseq
        %v1103 = vshrl.u32 %v1102, 7
        %v1104 = vsub.s32 %v1101, %v1103
        %v1105 = vrot.slane %v1098, %v1104
        %v1106 = vcombine.low %v1010, %v1017
        %v1108 = vunpack.c.l.s4 1983009808
        %v1109 = vunpack.c.0.s8 %v1108
        %v1110 = vlaneseq
        %v1111 = vshrl.u32 %v1110, 7
        %v1112 = vsub.s32 %v1109, %v1111
        %v1113 = vrot.slane %v1106, %v1112
        %v1114 = vcombine.low %v1020, %v1021
        %v1116 = vunpack.c.l.s4 1983009808
        %v1117 = vunpack.c.0.s8 %v1116
        %v1118 = vlaneseq
        %v1119 = vshrl.u32 %v1118, 7
        %v1120 = vsub.s32 %v1117, %v1119
        %v1121 = vrot.slane %v1114, %v1120
        %v1122 = vcombine.low %v1097, %v1105
        %v1123 = vcombine.high %v1097, %v1105
        %v1125 = vunpack.c.l.s4 1934713408
        %v1126 = vunpack.c.0.s8 %v1125
        %v1127 = vlaneseq
        %v1128 = vshrl.u32 %v1127, 7
        %v1129 = vsub.s32 %v1126, %v1128
        %v1130 = vrot.slane %v1122, %v1129
        %v1132 = vunpack.c.l.s4 1934713408
        %v1133 = vunpack.c.0.s8 %v1132
        %v1134 = vlaneseq
        %v1135 = vshrl.u32 %v1134, 7
        %v1136 = vsub.s32 %v1133, %v1135
        %v1137 = vrot.slane %v1123, %v1136
        %v1138 = vcombine.low %v1113, %v1121
        %v1139 = vcombine.high %v1113, %v1121
        %v1141 = vunpack.c.l.s4 1934713408
        %v1142 = vunpack.c.0.s8 %v1141
        %v1143 = vlaneseq
        %v1144 = vshrl.u32 %v1143, 7
        %v1145 = vsub.s32 %v1142, %v1144
        %v1146 = vrot.slane %v1138, %v1145
        %v1148 = vunpack.c.l.s4 1934713408
        %v1149 = vunpack.c.0.s8 %v1148
        %v1150 = vlaneseq
        %v1151 = vshrl.u32 %v1150, 7
        %v1152 = vsub.s32 %v1149, %v1151
        %v1153 = vrot.slane %v1139, %v1152
        %v1154 = vcombine.low %v1130, %v1146
        %v1155 = vcombine.high %v1130, %v1146
        %v1156 = vcombine.low %v1137, %v1153
        %v1157 = vcombine.high %v1137, %v1153
        %1158 = vrot.lane.b32.xlu0 %v564, 64
        %v1159 = vpop.permute.xlu0 %1158
        %1160 = vrot.lane.b32.xlu0 %v567, 64
        %v1161 = vpop.permute.xlu0 %1160
        %1162 = vrot.lane.b32.xlu0 %v573, 64
        %v1163 = vpop.permute.xlu0 %1162
        %1164 = vrot.lane.b32.xlu0 %v575, 64
        %v1165 = vpop.permute.xlu0 %1164
        %1166 = vrot.lane.b32.xlu0 %v579, 64
        %v1167 = vpop.permute.xlu0 %1166
        %1168 = vrot.lane.b32.xlu0 %v581, 64
        %v1169 = vpop.permute.xlu0 %1168
        %1170 = vrot.lane.b32.xlu0 %v585, 64
        %v1171 = vpop.permute.xlu0 %1170
        %1172 = vrot.lane.b32.xlu0 %v587, 64
        %v1173 = vpop.permute.xlu0 %1172
        %v1182 = vcombine.low %v1159, %v1167
        %v1183 = vcombine.high %v1159, %v1167
        %v1185 = vunpack.c.l.s4 1983009808
        %v1186 = vunpack.c.0.s8 %v1185
        %v1187 = vlaneseq
        %v1188 = vshrl.u32 %v1187, 7
        %v1189 = vsub.s32 %v1186, %v1188
        %v1190 = vrot.slane %v1182, %v1189
        %v1192 = vunpack.c.l.s4 1983009808
        %v1193 = vunpack.c.0.s8 %v1192
        %v1194 = vlaneseq
        %v1195 = vshrl.u32 %v1194, 7
        %v1196 = vsub.s32 %v1193, %v1195
        %v1197 = vrot.slane %v1183, %v1196
        %v1198 = vcombine.low %v1163, %v1171
        %v1199 = vcombine.high %v1163, %v1171
        %v1201 = vunpack.c.l.s4 1983009808
        %v1202 = vunpack.c.0.s8 %v1201
        %v1203 = vlaneseq
        %v1204 = vshrl.u32 %v1203, 7
        %v1205 = vsub.s32 %v1202, %v1204
        %v1206 = vrot.slane %v1198, %v1205
        %v1208 = vunpack.c.l.s4 1983009808
        %v1209 = vunpack.c.0.s8 %v1208
        %v1210 = vlaneseq
        %v1211 = vshrl.u32 %v1210, 7
        %v1212 = vsub.s32 %v1209, %v1211
        %v1213 = vrot.slane %v1199, %v1212
        %v1214 = vcombine.low %v1190, %v1206
        %v1215 = vcombine.high %v1190, %v1206
        %v1217 = vunpack.c.l.s4 1934713408
        %v1218 = vunpack.c.0.s8 %v1217
        %v1219 = vlaneseq
        %v1220 = vshrl.u32 %v1219, 7
        %v1221 = vsub.s32 %v1218, %v1220
        %v1222 = vrot.slane %v1214, %v1221
        %v1224 = vunpack.c.l.s4 1934713408
        %v1225 = vunpack.c.0.s8 %v1224
        %v1226 = vlaneseq
        %v1227 = vshrl.u32 %v1226, 7
        %v1228 = vsub.s32 %v1225, %v1227
        %v1229 = vrot.slane %v1215, %v1228
        %v1230 = vcombine.low %v1197, %v1213
        %v1231 = vcombine.high %v1197, %v1213
        %v1233 = vunpack.c.l.s4 1934713408
        %v1234 = vunpack.c.0.s8 %v1233
        %v1235 = vlaneseq
        %v1236 = vshrl.u32 %v1235, 7
        %v1237 = vsub.s32 %v1234, %v1236
        %v1238 = vrot.slane %v1230, %v1237
        %v1240 = vunpack.c.l.s4 1934713408
        %v1241 = vunpack.c.0.s8 %v1240
        %v1242 = vlaneseq
        %v1243 = vshrl.u32 %v1242, 7
        %v1244 = vsub.s32 %v1241, %v1243
        %v1245 = vrot.slane %v1231, %v1244
        %v1246 = vcombine.high %v1222, 0.0
        %v1247 = vcombine.high %v1229, 0.0
        %v1248 = vcombine.high %v1238, 0.0
        %v1249 = vcombine.high %v1245, 0.0
        %v1250 = vcombine.low %v1161, %v1169
        %v1251 = vcombine.high %v1161, %v1169
        %v1253 = vunpack.c.l.s4 1983009808
        %v1254 = vunpack.c.0.s8 %v1253
        %v1255 = vlaneseq
        %v1256 = vshrl.u32 %v1255, 7
        %v1257 = vsub.s32 %v1254, %v1256
        %v1258 = vrot.slane %v1250, %v1257
        %v1260 = vunpack.c.l.s4 1983009808
        %v1261 = vunpack.c.0.s8 %v1260
        %v1262 = vlaneseq
        %v1263 = vshrl.u32 %v1262, 7
        %v1264 = vsub.s32 %v1261, %v1263
        %v1265 = vrot.slane %v1251, %v1264
        %v1266 = vcombine.low %v1165, %v1173
        %v1267 = vcombine.high %v1165, %v1173
        %v1269 = vunpack.c.l.s4 1983009808
        %v1270 = vunpack.c.0.s8 %v1269
        %v1271 = vlaneseq
        %v1272 = vshrl.u32 %v1271, 7
        %v1273 = vsub.s32 %v1270, %v1272
        %v1274 = vrot.slane %v1266, %v1273
        %v1276 = vunpack.c.l.s4 1983009808
        %v1277 = vunpack.c.0.s8 %v1276
        %v1278 = vlaneseq
        %v1279 = vshrl.u32 %v1278, 7
        %v1280 = vsub.s32 %v1277, %v1279
        %v1281 = vrot.slane %v1267, %v1280
        %v1282 = vcombine.low %v1258, %v1274
        %v1283 = vcombine.high %v1258, %v1274
        %v1285 = vunpack.c.l.s4 1934713408
        %v1286 = vunpack.c.0.s8 %v1285
        %v1287 = vlaneseq
        %v1288 = vshrl.u32 %v1287, 7
        %v1289 = vsub.s32 %v1286, %v1288
        %v1290 = vrot.slane %v1282, %v1289
        %v1292 = vunpack.c.l.s4 1934713408
        %v1293 = vunpack.c.0.s8 %v1292
        %v1294 = vlaneseq
        %v1295 = vshrl.u32 %v1294, 7
        %v1296 = vsub.s32 %v1293, %v1295
        %v1297 = vrot.slane %v1283, %v1296
        %v1298 = vcombine.low %v1265, %v1281
        %v1299 = vcombine.high %v1265, %v1281
        %v1301 = vunpack.c.l.s4 1934713408
        %v1302 = vunpack.c.0.s8 %v1301
        %v1303 = vlaneseq
        %v1304 = vshrl.u32 %v1303, 7
        %v1305 = vsub.s32 %v1302, %v1304
        %v1306 = vrot.slane %v1298, %v1305
        %v1308 = vunpack.c.l.s4 1934713408
        %v1309 = vunpack.c.0.s8 %v1308
        %v1310 = vlaneseq
        %v1311 = vshrl.u32 %v1310, 7
        %v1312 = vsub.s32 %v1309, %v1311
        %v1313 = vrot.slane %v1299, %v1312
        %v1314 = vcombine.high %v1290, 0.0
        %v1315 = vcombine.high %v1297, 0.0
        %v1316 = vcombine.high %v1306, 0.0
        %v1317 = vcombine.high %v1313, 0.0
        %v1318 = vcombine.low %v1222, %v1229
        %v1320 = vunpack.c.l.s4 1983009808
        %v1321 = vunpack.c.0.s8 %v1320
        %v1322 = vlaneseq
        %v1323 = vshrl.u32 %v1322, 7
        %v1324 = vsub.s32 %v1321, %v1323
        %v1325 = vrot.slane %v1318, %v1324
        %v1326 = vcombine.low %v1246, %v1247
        %v1328 = vunpack.c.l.s4 1983009808
        %v1329 = vunpack.c.0.s8 %v1328
        %v1330 = vlaneseq
        %v1331 = vshrl.u32 %v1330, 7
        %v1332 = vsub.s32 %v1329, %v1331
        %v1333 = vrot.slane %v1326, %v1332
        %v1334 = vcombine.low %v1238, %v1245
        %v1336 = vunpack.c.l.s4 1983009808
        %v1337 = vunpack.c.0.s8 %v1336
        %v1338 = vlaneseq
        %v1339 = vshrl.u32 %v1338, 7
        %v1340 = vsub.s32 %v1337, %v1339
        %v1341 = vrot.slane %v1334, %v1340
        %v1342 = vcombine.low %v1248, %v1249
        %v1344 = vunpack.c.l.s4 1983009808
        %v1345 = vunpack.c.0.s8 %v1344
        %v1346 = vlaneseq
        %v1347 = vshrl.u32 %v1346, 7
        %v1348 = vsub.s32 %v1345, %v1347
        %v1349 = vrot.slane %v1342, %v1348
        %v1350 = vcombine.low %v1325, %v1333
        %v1351 = vcombine.high %v1325, %v1333
        %v1353 = vunpack.c.l.s4 1934713408
        %v1354 = vunpack.c.0.s8 %v1353
        %v1355 = vlaneseq
        %v1356 = vshrl.u32 %v1355, 7
        %v1357 = vsub.s32 %v1354, %v1356
        %v1358 = vrot.slane %v1350, %v1357
        %v1360 = vunpack.c.l.s4 1934713408
        %v1361 = vunpack.c.0.s8 %v1360
        %v1362 = vlaneseq
        %v1363 = vshrl.u32 %v1362, 7
        %v1364 = vsub.s32 %v1361, %v1363
        %v1365 = vrot.slane %v1351, %v1364
        %v1366 = vcombine.low %v1341, %v1349
        %v1367 = vcombine.high %v1341, %v1349
        %v1369 = vunpack.c.l.s4 1934713408
        %v1370 = vunpack.c.0.s8 %v1369
        %v1371 = vlaneseq
        %v1372 = vshrl.u32 %v1371, 7
        %v1373 = vsub.s32 %v1370, %v1372
        %v1374 = vrot.slane %v1366, %v1373
        %v1376 = vunpack.c.l.s4 1934713408
        %v1377 = vunpack.c.0.s8 %v1376
        %v1378 = vlaneseq
        %v1379 = vshrl.u32 %v1378, 7
        %v1380 = vsub.s32 %v1377, %v1379
        %v1381 = vrot.slane %v1367, %v1380
        %v1382 = vcombine.low %v1358, %v1374
        %v1383 = vcombine.high %v1358, %v1374
        %v1384 = vcombine.low %v1365, %v1381
        %v1385 = vcombine.high %v1365, %v1381
        %v1386 = vcombine.low %v1290, %v1297
        %v1388 = vunpack.c.l.s4 1983009808
        %v1389 = vunpack.c.0.s8 %v1388
        %v1390 = vlaneseq
        %v1391 = vshrl.u32 %v1390, 7
        %v1392 = vsub.s32 %v1389, %v1391
        %v1393 = vrot.slane %v1386, %v1392
        %v1394 = vcombine.low %v1314, %v1315
        %v1396 = vunpack.c.l.s4 1983009808
        %v1397 = vunpack.c.0.s8 %v1396
        %v1398 = vlaneseq
        %v1399 = vshrl.u32 %v1398, 7
        %v1400 = vsub.s32 %v1397, %v1399
        %v1401 = vrot.slane %v1394, %v1400
        %v1402 = vcombine.low %v1306, %v1313
        %v1404 = vunpack.c.l.s4 1983009808
        %v1405 = vunpack.c.0.s8 %v1404
        %v1406 = vlaneseq
        %v1407 = vshrl.u32 %v1406, 7
        %v1408 = vsub.s32 %v1405, %v1407
        %v1409 = vrot.slane %v1402, %v1408
        %v1410 = vcombine.low %v1316, %v1317
        %v1412 = vunpack.c.l.s4 1983009808
        %v1413 = vunpack.c.0.s8 %v1412
        %v1414 = vlaneseq
        %v1415 = vshrl.u32 %v1414, 7
        %v1416 = vsub.s32 %v1413, %v1415
        %v1417 = vrot.slane %v1410, %v1416
        %v1418 = vcombine.low %v1393, %v1401
        %v1419 = vcombine.high %v1393, %v1401
        %v1421 = vunpack.c.l.s4 1934713408
        %v1422 = vunpack.c.0.s8 %v1421
        %v1423 = vlaneseq
        %v1424 = vshrl.u32 %v1423, 7
        %v1425 = vsub.s32 %v1422, %v1424
        %v1426 = vrot.slane %v1418, %v1425
        %v1428 = vunpack.c.l.s4 1934713408
        %v1429 = vunpack.c.0.s8 %v1428
        %v1430 = vlaneseq
        %v1431 = vshrl.u32 %v1430, 7
        %v1432 = vsub.s32 %v1429, %v1431
        %v1433 = vrot.slane %v1419, %v1432
        %v1434 = vcombine.low %v1409, %v1417
        %v1435 = vcombine.high %v1409, %v1417
        %v1437 = vunpack.c.l.s4 1934713408
        %v1438 = vunpack.c.0.s8 %v1437
        %v1439 = vlaneseq
        %v1440 = vshrl.u32 %v1439, 7
        %v1441 = vsub.s32 %v1438, %v1440
        %v1442 = vrot.slane %v1434, %v1441
        %v1444 = vunpack.c.l.s4 1934713408
        %v1445 = vunpack.c.0.s8 %v1444
        %v1446 = vlaneseq
        %v1447 = vshrl.u32 %v1446, 7
        %v1448 = vsub.s32 %v1445, %v1447
        %v1449 = vrot.slane %v1435, %v1448
        %v1450 = vcombine.low %v1426, %v1442
        %v1451 = vcombine.high %v1426, %v1442
        %v1452 = vcombine.low %v1433, %v1449
        %v1453 = vcombine.high %v1433, %v1449
        %v1454 = vpack.c.bf16 %v790, %v790
        %v1455 = vpack.c.bf16 %v791, %v791
        %v1456 = vpack.c.bf16 %v792, %v792
        %v1457 = vpack.c.bf16 %v793, %v793
        %v1458 = vpack.c.bf16 %v858, %v858
        %v1459 = vpack.c.bf16 %v859, %v859
        %v1460 = vpack.c.bf16 %v860, %v860
        %v1461 = vpack.c.bf16 %v861, %v861
        %v1462 = vpack.c.bf16 %v1086, %v1086
        %v1463 = vpack.c.bf16 %v1087, %v1087
        %v1464 = vpack.c.bf16 %v1088, %v1088
        %v1465 = vpack.c.bf16 %v1089, %v1089
        %v1466 = vpack.c.bf16 %v1154, %v1154
        %v1467 = vpack.c.bf16 %v1155, %v1155
        %v1468 = vpack.c.bf16 %v1156, %v1156
        %v1469 = vpack.c.bf16 %v1157, %v1157
        %vm1470 = vcmask 64512
        %v1472 = vsel %vm1470, %v1454, 0
        %v1475 = vsel %vm1470, %v1462, 0
        %1477 = vmatprep.subr.bf16.mxu0 0
        %1478 = vmatpush1.bf16.xpose.msra.mxu0 0
        %1479 = vmatprep.subr.bf16.mxu0 0
        %1480 = vmatpush1.bf16.xpose.msra.mxu0 0
        %1481 = vmatprep.subr.bf16.mxu0 0
        %1482 = vmatpush1.bf16.xpose.msra.mxu0 0
        %1483 = vmatprep.subr.bf16.mxu0 0
        %1484 = vmatpush1.bf16.xpose.msra.mxu0 0
        %1485 = vmatprep.subr.bf16.mxu0 0
        %1486 = vmatpush1.bf16.xpose.msra.mxu0 0
        %1487 = vmatprep.subr.bf16.mxu0 0
        %1488 = vmatpush1.bf16.xpose.msra.mxu0 0
        %1489 = vmatprep.subr.bf16.mxu0 0
        %1490 = vmatpush1.bf16.xpose.msra.mxu0 0
        %1491 = vmatprep.subr.bf16.mxu0 0
        %1492 = vmatpush1.bf16.xpose.msra.mxu0 %v1475
        %1493 = vmatprep.subr.bf16.mxu0 0
        %1494 = vmatpush2.bf16.xpose.msra.mxu0 0
        %1495 = vmatprep.subr.bf16.mxu0 0
        %1496 = vmatpush2.bf16.xpose.msra.mxu0 0
        %1497 = vmatprep.subr.bf16.mxu0 0
        %1498 = vmatpush2.bf16.xpose.msra.mxu0 0
        %1499 = vmatprep.subr.bf16.mxu0 0
        %1500 = vmatpush2.bf16.xpose.msra.mxu0 0
        %1501 = vmatprep.subr.bf16.mxu0 0
        %1502 = vmatpush2.bf16.xpose.msra.mxu0 0
        %1503 = vmatprep.subr.bf16.mxu0 0
        %1504 = vmatpush2.bf16.xpose.msra.mxu0 0
        %1505 = vmatprep.subr.bf16.mxu0 0
        %1506 = vmatpush2.bf16.xpose.msra.mxu0 0
        %1507 = vmatprep.subr.bf16.mxu0 0
        %1508 = vmatpush2.bf16.xpose.msra.mxu0 0
        %1509 = vmatprep.mubr.bf16.mxu0 0
        %1510 = vmatmul.mubr.bf16.gmra.mxu0 %v1472
        %v1511 = vpop.f32.mrf.mxu0
        %v1512 = vadd.f32 0.0, %v1511
        %v1513 = vpop.f32.mrf.mxu0
        %v1514 = vpop.f32.mrf.mxu0
        %v1515 = vpop.f32.mrf.mxu0
        %1516 = vdwg.mxu0
        %v1518 = vsel %vm1470, %v1455, 0
        %v1521 = vsel %vm1470, %v1463, 0
        %1523 = vmatprep.subr.bf16.mxu0 0
        %1524 = vmatpush1.bf16.xpose.msra.mxu0 0
        %1525 = vmatprep.subr.bf16.mxu0 0
        %1526 = vmatpush1.bf16.xpose.msra.mxu0 0
        %1527 = vmatprep.subr.bf16.mxu0 0
        %1528 = vmatpush1.bf16.xpose.msra.mxu0 0
        %1529 = vmatprep.subr.bf16.mxu0 0
        %1530 = vmatpush1.bf16.xpose.msra.mxu0 0
        %1531 = vmatprep.subr.bf16.mxu0 0
        %1532 = vmatpush1.bf16.xpose.msra.mxu0 0
        %1533 = vmatprep.subr.bf16.mxu0 0
        %1534 = vmatpush1.bf16.xpose.msra.mxu0 0
        %1535 = vmatprep.subr.bf16.mxu0 0
        %1536 = vmatpush1.bf16.xpose.msra.mxu0 0
        %1537 = vmatprep.subr.bf16.mxu0 0
        %1538 = vmatpush1.bf16.xpose.msra.mxu0 %v1521
        %1539 = vmatprep.subr.bf16.mxu0 0
        %1540 = vmatpush2.bf16.xpose.msra.mxu0 0
        %1541 = vmatprep.subr.bf16.mxu0 0
        %1542 = vmatpush2.bf16.xpose.msra.mxu0 0
        %1543 = vmatprep.subr.bf16.mxu0 0
        %1544 = vmatpush2.bf16.xpose.msra.mxu0 0
        %1545 = vmatprep.subr.bf16.mxu0 0
        %1546 = vmatpush2.bf16.xpose.msra.mxu0 0
        %1547 = vmatprep.subr.bf16.mxu0 0
        %1548 = vmatpush2.bf16.xpose.msra.mxu0 0
        %1549 = vmatprep.subr.bf16.mxu0 0
        %1550 = vmatpush2.bf16.xpose.msra.mxu0 0
        %1551 = vmatprep.subr.bf16.mxu0 0
        %1552 = vmatpush2.bf16.xpose.msra.mxu0 0
        %1553 = vmatprep.subr.bf16.mxu0 0
        %1554 = vmatpush2.bf16.xpose.msra.mxu0 0
        %1555 = vmatprep.mubr.bf16.mxu0 0
        %1556 = vmatmul.mubr.bf16.gmra.mxu0 %v1518
        %v1557 = vpop.f32.mrf.mxu0
        %v1558 = vadd.f32 0.0, %v1557
        %v1559 = vpop.f32.mrf.mxu0
        %v1560 = vpop.f32.mrf.mxu0
        %v1561 = vpop.f32.mrf.mxu0
        %1562 = vdwg.mxu0
        %v1564 = vsel %vm1470, %v1456, 0
        %v1567 = vsel %vm1470, %v1464, 0
        %1569 = vmatprep.subr.bf16.mxu0 0
        %1570 = vmatpush1.bf16.xpose.msra.mxu0 0
        %1571 = vmatprep.subr.bf16.mxu0 0
        %1572 = vmatpush1.bf16.xpose.msra.mxu0 0
        %1573 = vmatprep.subr.bf16.mxu0 0
        %1574 = vmatpush1.bf16.xpose.msra.mxu0 0
        %1575 = vmatprep.subr.bf16.mxu0 0
        %1576 = vmatpush1.bf16.xpose.msra.mxu0 0
        %1577 = vmatprep.subr.bf16.mxu0 0
        %1578 = vmatpush1.bf16.xpose.msra.mxu0 0
        %1579 = vmatprep.subr.bf16.mxu0 0
        %1580 = vmatpush1.bf16.xpose.msra.mxu0 0
        %1581 = vmatprep.subr.bf16.mxu0 0
        %1582 = vmatpush1.bf16.xpose.msra.mxu0 0
        %1583 = vmatprep.subr.bf16.mxu0 0
        %1584 = vmatpush1.bf16.xpose.msra.mxu0 %v1567
        %1585 = vmatprep.subr.bf16.mxu0 0
        %1586 = vmatpush2.bf16.xpose.msra.mxu0 0
        %1587 = vmatprep.subr.bf16.mxu0 0
        %1588 = vmatpush2.bf16.xpose.msra.mxu0 0
        %1589 = vmatprep.subr.bf16.mxu0 0
        %1590 = vmatpush2.bf16.xpose.msra.mxu0 0
        %1591 = vmatprep.subr.bf16.mxu0 0
        %1592 = vmatpush2.bf16.xpose.msra.mxu0 0
        %1593 = vmatprep.subr.bf16.mxu0 0
        %1594 = vmatpush2.bf16.xpose.msra.mxu0 0
        %1595 = vmatprep.subr.bf16.mxu0 0
        %1596 = vmatpush2.bf16.xpose.msra.mxu0 0
        %1597 = vmatprep.subr.bf16.mxu0 0
        %1598 = vmatpush2.bf16.xpose.msra.mxu0 0
        %1599 = vmatprep.subr.bf16.mxu0 0
        %1600 = vmatpush2.bf16.xpose.msra.mxu0 0
        %1601 = vmatprep.mubr.bf16.mxu0 0
        %1602 = vmatmul.mubr.bf16.gmra.mxu0 %v1564
        %v1603 = vpop.f32.mrf.mxu0
        %v1604 = vadd.f32 0.0, %v1603
        %v1605 = vpop.f32.mrf.mxu0
        %v1606 = vpop.f32.mrf.mxu0
        %v1607 = vpop.f32.mrf.mxu0
        %1608 = vdwg.mxu0
        %v1610 = vsel %vm1470, %v1457, 0
        %v1613 = vsel %vm1470, %v1465, 0
        %1615 = vmatprep.subr.bf16.mxu0 0
        %1616 = vmatpush1.bf16.xpose.msra.mxu0 0
        %1617 = vmatprep.subr.bf16.mxu0 0
        %1618 = vmatpush1.bf16.xpose.msra.mxu0 0
        %1619 = vmatprep.subr.bf16.mxu0 0
        %1620 = vmatpush1.bf16.xpose.msra.mxu0 0
        %1621 = vmatprep.subr.bf16.mxu0 0
        %1622 = vmatpush1.bf16.xpose.msra.mxu0 0
        %1623 = vmatprep.subr.bf16.mxu0 0
        %1624 = vmatpush1.bf16.xpose.msra.mxu0 0
        %1625 = vmatprep.subr.bf16.mxu0 0
        %1626 = vmatpush1.bf16.xpose.msra.mxu0 0
        %1627 = vmatprep.subr.bf16.mxu0 0
        %1628 = vmatpush1.bf16.xpose.msra.mxu0 0
        %1629 = vmatprep.subr.bf16.mxu0 0
        %1630 = vmatpush1.bf16.xpose.msra.mxu0 %v1613
        %1631 = vmatprep.subr.bf16.mxu0 0
        %1632 = vmatpush2.bf16.xpose.msra.mxu0 0
        %1633 = vmatprep.subr.bf16.mxu0 0
        %1634 = vmatpush2.bf16.xpose.msra.mxu0 0
        %1635 = vmatprep.subr.bf16.mxu0 0
        %1636 = vmatpush2.bf16.xpose.msra.mxu0 0
        %1637 = vmatprep.subr.bf16.mxu0 0
        %1638 = vmatpush2.bf16.xpose.msra.mxu0 0
        %1639 = vmatprep.subr.bf16.mxu0 0
        %1640 = vmatpush2.bf16.xpose.msra.mxu0 0
        %1641 = vmatprep.subr.bf16.mxu0 0
        %1642 = vmatpush2.bf16.xpose.msra.mxu0 0
        %1643 = vmatprep.subr.bf16.mxu0 0
        %1644 = vmatpush2.bf16.xpose.msra.mxu0 0
        %1645 = vmatprep.subr.bf16.mxu0 0
        %1646 = vmatpush2.bf16.xpose.msra.mxu0 0
        %1647 = vmatprep.mubr.bf16.mxu0 0
        %1648 = vmatmul.mubr.bf16.gmra.mxu0 %v1610
        %v1649 = vpop.f32.mrf.mxu0
        %v1650 = vadd.f32 0.0, %v1649
        %v1651 = vpop.f32.mrf.mxu0
        %v1652 = vpop.f32.mrf.mxu0
        %v1653 = vpop.f32.mrf.mxu0
        %1654 = vdwg.mxu0
        %v1656 = vsel %vm1470, %v1458, 0
        %v1659 = vsel %vm1470, %v1466, 0
        %1661 = vmatprep.subr.bf16.mxu0 0
        %1662 = vmatpush1.bf16.xpose.msra.mxu0 0
        %1663 = vmatprep.subr.bf16.mxu0 0
        %1664 = vmatpush1.bf16.xpose.msra.mxu0 0
        %1665 = vmatprep.subr.bf16.mxu0 0
        %1666 = vmatpush1.bf16.xpose.msra.mxu0 0
        %1667 = vmatprep.subr.bf16.mxu0 0
        %1668 = vmatpush1.bf16.xpose.msra.mxu0 0
        %1669 = vmatprep.subr.bf16.mxu0 0
        %1670 = vmatpush1.bf16.xpose.msra.mxu0 0
        %1671 = vmatprep.subr.bf16.mxu0 0
        %1672 = vmatpush1.bf16.xpose.msra.mxu0 0
        %1673 = vmatprep.subr.bf16.mxu0 0
        %1674 = vmatpush1.bf16.xpose.msra.mxu0 0
        %1675 = vmatprep.subr.bf16.mxu0 0
        %1676 = vmatpush1.bf16.xpose.msra.mxu0 %v1659
        %1677 = vmatprep.subr.bf16.mxu0 0
        %1678 = vmatpush2.bf16.xpose.msra.mxu0 0
        %1679 = vmatprep.subr.bf16.mxu0 0
        %1680 = vmatpush2.bf16.xpose.msra.mxu0 0
        %1681 = vmatprep.subr.bf16.mxu0 0
        %1682 = vmatpush2.bf16.xpose.msra.mxu0 0
        %1683 = vmatprep.subr.bf16.mxu0 0
        %1684 = vmatpush2.bf16.xpose.msra.mxu0 0
        %1685 = vmatprep.subr.bf16.mxu0 0
        %1686 = vmatpush2.bf16.xpose.msra.mxu0 0
        %1687 = vmatprep.subr.bf16.mxu0 0
        %1688 = vmatpush2.bf16.xpose.msra.mxu0 0
        %1689 = vmatprep.subr.bf16.mxu0 0
        %1690 = vmatpush2.bf16.xpose.msra.mxu0 0
        %1691 = vmatprep.subr.bf16.mxu0 0
        %1692 = vmatpush2.bf16.xpose.msra.mxu0 0
        %1693 = vmatprep.mubr.bf16.mxu0 0
        %1694 = vmatmul.mubr.bf16.gmra.mxu0 %v1656
        %v1695 = vpop.f32.mrf.mxu0
        %v1696 = vadd.f32 0.0, %v1695
        %v1697 = vpop.f32.mrf.mxu0
        %v1698 = vpop.f32.mrf.mxu0
        %v1699 = vpop.f32.mrf.mxu0
        %1700 = vdwg.mxu0
        %v1702 = vsel %vm1470, %v1459, 0
        %v1705 = vsel %vm1470, %v1467, 0
        %1707 = vmatprep.subr.bf16.mxu0 0
        %1708 = vmatpush1.bf16.xpose.msra.mxu0 0
        %1709 = vmatprep.subr.bf16.mxu0 0
        %1710 = vmatpush1.bf16.xpose.msra.mxu0 0
        %1711 = vmatprep.subr.bf16.mxu0 0
        %1712 = vmatpush1.bf16.xpose.msra.mxu0 0
        %1713 = vmatprep.subr.bf16.mxu0 0
        %1714 = vmatpush1.bf16.xpose.msra.mxu0 0
        %1715 = vmatprep.subr.bf16.mxu0 0
        %1716 = vmatpush1.bf16.xpose.msra.mxu0 0
        %1717 = vmatprep.subr.bf16.mxu0 0
        %1718 = vmatpush1.bf16.xpose.msra.mxu0 0
        %1719 = vmatprep.subr.bf16.mxu0 0
        %1720 = vmatpush1.bf16.xpose.msra.mxu0 0
        %1721 = vmatprep.subr.bf16.mxu0 0
        %1722 = vmatpush1.bf16.xpose.msra.mxu0 %v1705
        %1723 = vmatprep.subr.bf16.mxu0 0
        %1724 = vmatpush2.bf16.xpose.msra.mxu0 0
        %1725 = vmatprep.subr.bf16.mxu0 0
        %1726 = vmatpush2.bf16.xpose.msra.mxu0 0
        %1727 = vmatprep.subr.bf16.mxu0 0
        %1728 = vmatpush2.bf16.xpose.msra.mxu0 0
        %1729 = vmatprep.subr.bf16.mxu0 0
        %1730 = vmatpush2.bf16.xpose.msra.mxu0 0
        %1731 = vmatprep.subr.bf16.mxu0 0
        %1732 = vmatpush2.bf16.xpose.msra.mxu0 0
        %1733 = vmatprep.subr.bf16.mxu0 0
        %1734 = vmatpush2.bf16.xpose.msra.mxu0 0
        %1735 = vmatprep.subr.bf16.mxu0 0
        %1736 = vmatpush2.bf16.xpose.msra.mxu0 0
        %1737 = vmatprep.subr.bf16.mxu0 0
        %1738 = vmatpush2.bf16.xpose.msra.mxu0 0
        %1739 = vmatprep.mubr.bf16.mxu0 0
        %1740 = vmatmul.mubr.bf16.gmra.mxu0 %v1702
        %v1741 = vpop.f32.mrf.mxu0
        %v1742 = vadd.f32 0.0, %v1741
        %v1743 = vpop.f32.mrf.mxu0
        %v1744 = vpop.f32.mrf.mxu0
        %v1745 = vpop.f32.mrf.mxu0
        %1746 = vdwg.mxu0
        %v1748 = vsel %vm1470, %v1460, 0
        %v1751 = vsel %vm1470, %v1468, 0
        %1753 = vmatprep.subr.bf16.mxu0 0
        %1754 = vmatpush1.bf16.xpose.msra.mxu0 0
        %1755 = vmatprep.subr.bf16.mxu0 0
        %1756 = vmatpush1.bf16.xpose.msra.mxu0 0
        %1757 = vmatprep.subr.bf16.mxu0 0
        %1758 = vmatpush1.bf16.xpose.msra.mxu0 0
        %1759 = vmatprep.subr.bf16.mxu0 0
        %1760 = vmatpush1.bf16.xpose.msra.mxu0 0
        %1761 = vmatprep.subr.bf16.mxu0 0
        %1762 = vmatpush1.bf16.xpose.msra.mxu0 0
        %1763 = vmatprep.subr.bf16.mxu0 0
        %1764 = vmatpush1.bf16.xpose.msra.mxu0 0
        %1765 = vmatprep.subr.bf16.mxu0 0
        %1766 = vmatpush1.bf16.xpose.msra.mxu0 0
        %1767 = vmatprep.subr.bf16.mxu0 0
        %1768 = vmatpush1.bf16.xpose.msra.mxu0 %v1751
        %1769 = vmatprep.subr.bf16.mxu0 0
        %1770 = vmatpush2.bf16.xpose.msra.mxu0 0
        %1771 = vmatprep.subr.bf16.mxu0 0
        %1772 = vmatpush2.bf16.xpose.msra.mxu0 0
        %1773 = vmatprep.subr.bf16.mxu0 0
        %1774 = vmatpush2.bf16.xpose.msra.mxu0 0
        %1775 = vmatprep.subr.bf16.mxu0 0
        %1776 = vmatpush2.bf16.xpose.msra.mxu0 0
        %1777 = vmatprep.subr.bf16.mxu0 0
        %1778 = vmatpush2.bf16.xpose.msra.mxu0 0
        %1779 = vmatprep.subr.bf16.mxu0 0
        %1780 = vmatpush2.bf16.xpose.msra.mxu0 0
        %1781 = vmatprep.subr.bf16.mxu0 0
        %1782 = vmatpush2.bf16.xpose.msra.mxu0 0
        %1783 = vmatprep.subr.bf16.mxu0 0
        %1784 = vmatpush2.bf16.xpose.msra.mxu0 0
        %1785 = vmatprep.mubr.bf16.mxu0 0
        %1786 = vmatmul.mubr.bf16.gmra.mxu0 %v1748
        %v1787 = vpop.f32.mrf.mxu0
        %v1788 = vadd.f32 0.0, %v1787
        %v1789 = vpop.f32.mrf.mxu0
        %v1790 = vpop.f32.mrf.mxu0
        %v1791 = vpop.f32.mrf.mxu0
        %1792 = vdwg.mxu0
        %v1794 = vsel %vm1470, %v1461, 0
        %v1797 = vsel %vm1470, %v1469, 0
        %1799 = vmatprep.subr.bf16.mxu0 0
        %1800 = vmatpush1.bf16.xpose.msra.mxu0 0
        %1801 = vmatprep.subr.bf16.mxu0 0
        %1802 = vmatpush1.bf16.xpose.msra.mxu0 0
        %1803 = vmatprep.subr.bf16.mxu0 0
        %1804 = vmatpush1.bf16.xpose.msra.mxu0 0
        %1805 = vmatprep.subr.bf16.mxu0 0
        %1806 = vmatpush1.bf16.xpose.msra.mxu0 0
        %1807 = vmatprep.subr.bf16.mxu0 0
        %1808 = vmatpush1.bf16.xpose.msra.mxu0 0
        %1809 = vmatprep.subr.bf16.mxu0 0
        %1810 = vmatpush1.bf16.xpose.msra.mxu0 0
        %1811 = vmatprep.subr.bf16.mxu0 0
        %1812 = vmatpush1.bf16.xpose.msra.mxu0 0
        %1813 = vmatprep.subr.bf16.mxu0 0
        %1814 = vmatpush1.bf16.xpose.msra.mxu0 %v1797
        %1815 = vmatprep.subr.bf16.mxu0 0
        %1816 = vmatpush2.bf16.xpose.msra.mxu0 0
        %1817 = vmatprep.subr.bf16.mxu0 0
        %1818 = vmatpush2.bf16.xpose.msra.mxu0 0
        %1819 = vmatprep.subr.bf16.mxu0 0
        %1820 = vmatpush2.bf16.xpose.msra.mxu0 0
        %1821 = vmatprep.subr.bf16.mxu0 0
        %1822 = vmatpush2.bf16.xpose.msra.mxu0 0
        %1823 = vmatprep.subr.bf16.mxu0 0
        %1824 = vmatpush2.bf16.xpose.msra.mxu0 0
        %1825 = vmatprep.subr.bf16.mxu0 0
        %1826 = vmatpush2.bf16.xpose.msra.mxu0 0
        %1827 = vmatprep.subr.bf16.mxu0 0
        %1828 = vmatpush2.bf16.xpose.msra.mxu0 0
        %1829 = vmatprep.subr.bf16.mxu0 0
        %1830 = vmatpush2.bf16.xpose.msra.mxu0 0
        %1831 = vmatprep.mubr.bf16.mxu0 0
        %1832 = vmatmul.mubr.bf16.gmra.mxu0 %v1794
        %v1833 = vpop.f32.mrf.mxu0
        %v1834 = vadd.f32 0.0, %v1833
        %v1835 = vpop.f32.mrf.mxu0
        %v1836 = vpop.f32.mrf.mxu0
        %v1837 = vpop.f32.mrf.mxu0
        %1838 = vdwg.mxu0
        %v1841 = vlaneseq
        %v1842 = vshrl.u32 %v1841, 7
        %v1843 = vsub.s32 0, %v1842
        %v1844 = vrot.slane %v497, %v1843
        %v1845 = vlaneseq
        %v1846 = vshrl.u32 %v1845, 7
        %v1847 = vsub.s32 0, %v1846
        %v1848 = vrot.slane %v498, %v1847
        %v1851 = vadd.f32 %v1512, %v1844
        %v1852 = vadd.f32 %v1558, %v1844
        %v1853 = vadd.f32 %v1604, %v1844
        %v1854 = vadd.f32 %v1650, %v1844
        %v1855 = vadd.f32 %v1696, %v1848
        %v1856 = vadd.f32 %v1742, %v1848
        %v1857 = vadd.f32 %v1788, %v1848
        %v1858 = vadd.f32 %v1834, %v1848
        %v1859 = vsel %vm1470, %v1851, -inf
        %1860 = vmax.xlane.f32.xlu0 %v1859
        %v1861 = vpop.xlane.xlu0 %1860
        %v1862 = vsel %vm1470, %v1852, -inf
        %1863 = vmax.xlane.f32.xlu0 %v1862
        %v1864 = vpop.xlane.xlu0 %1863
        %v1865 = vsel %vm1470, %v1853, -inf
        %1866 = vmax.xlane.f32.xlu0 %v1865
        %v1867 = vpop.xlane.xlu0 %1866
        %v1868 = vsel %vm1470, %v1854, -inf
        %1869 = vmax.xlane.f32.xlu0 %v1868
        %v1870 = vpop.xlane.xlu0 %1869
        %v1871 = vsel %vm1470, %v1855, -inf
        %1872 = vmax.xlane.f32.xlu0 %v1871
        %v1873 = vpop.xlane.xlu0 %1872
        %v1874 = vsel %vm1470, %v1856, -inf
        %1875 = vmax.xlane.f32.xlu0 %v1874
        %v1876 = vpop.xlane.xlu0 %1875
        %v1877 = vsel %vm1470, %v1857, -inf
        %1878 = vmax.xlane.f32.xlu0 %v1877
        %v1879 = vpop.xlane.xlu0 %1878
        %v1880 = vsel %vm1470, %v1858, -inf
        %1881 = vmax.xlane.f32.xlu0 %v1880
        %v1882 = vpop.xlane.xlu0 %1881
        %v1883 = vsub.f32 %v1851, %v1861
        %v1884 = vsub.f32 %v1852, %v1864
        %v1885 = vsub.f32 %v1853, %v1867
        %v1886 = vsub.f32 %v1854, %v1870
        %v1887 = vsub.f32 %v1855, %v1873
        %v1888 = vsub.f32 %v1856, %v1876
        %v1889 = vsub.f32 %v1857, %v1879
        %v1890 = vsub.f32 %v1858, %v1882
        %v1891 = vmul.f32 %v1883, 1.442695
        %v1892 = vpow.pop %v1891
        %v1893 = vmul.f32 %v1884, 1.442695
        %v1894 = vpow.pop %v1893
        %v1895 = vmul.f32 %v1885, 1.442695
        %v1896 = vpow.pop %v1895
        %v1897 = vmul.f32 %v1886, 1.442695
        %v1898 = vpow.pop %v1897
        %v1899 = vmul.f32 %v1887, 1.442695
        %v1900 = vpow.pop %v1899
        %v1901 = vmul.f32 %v1888, 1.442695
        %v1902 = vpow.pop %v1901
        %v1903 = vmul.f32 %v1889, 1.442695
        %v1904 = vpow.pop %v1903
        %v1905 = vmul.f32 %v1890, 1.442695
        %v1906 = vpow.pop %v1905
        %v1907 = vsel %vm1470, %v1892, 0.0
        %1908 = vadd.xlane.f32.xlu0 %v1907
        %v1909 = vpop.xlane.xlu0 %1908
        %v1910 = vsel %vm1470, %v1894, 0.0
        %1911 = vadd.xlane.f32.xlu0 %v1910
        %v1912 = vpop.xlane.xlu0 %1911
        %v1913 = vsel %vm1470, %v1896, 0.0
        %1914 = vadd.xlane.f32.xlu0 %v1913
        %v1915 = vpop.xlane.xlu0 %1914
        %v1916 = vsel %vm1470, %v1898, 0.0
        %1917 = vadd.xlane.f32.xlu0 %v1916
        %v1918 = vpop.xlane.xlu0 %1917
        %v1919 = vsel %vm1470, %v1900, 0.0
        %1920 = vadd.xlane.f32.xlu0 %v1919
        %v1921 = vpop.xlane.xlu0 %1920
        %v1922 = vsel %vm1470, %v1902, 0.0
        %1923 = vadd.xlane.f32.xlu0 %v1922
        %v1924 = vpop.xlane.xlu0 %1923
        %v1925 = vsel %vm1470, %v1904, 0.0
        %1926 = vadd.xlane.f32.xlu0 %v1925
        %v1927 = vpop.xlane.xlu0 %1926
        %v1928 = vsel %vm1470, %v1906, 0.0
        %1929 = vadd.xlane.f32.xlu0 %v1928
        %v1930 = vpop.xlane.xlu0 %1929
        %v1931 = vrcp.pop %v1909
        %v1932 = vrcp.pop %v1912
        %v1933 = vrcp.pop %v1915
        %v1934 = vrcp.pop %v1918
        %v1935 = vrcp.pop %v1921
        %v1936 = vrcp.pop %v1924
        %v1937 = vrcp.pop %v1927
        %v1938 = vrcp.pop %v1930
        %v1939 = vmul.f32 %v1892, %v1931
        %v1940 = vmul.f32 %v1894, %v1932
        %v1941 = vmul.f32 %v1896, %v1933
        %v1942 = vmul.f32 %v1898, %v1934
        %v1943 = vmul.f32 %v1900, %v1935
        %v1944 = vmul.f32 %v1902, %v1936
        %v1945 = vmul.f32 %v1904, %v1937
        %v1946 = vmul.f32 %v1906, %v1938
        %v1947 = vpack.c.bf16 %v1939, %v1939
        %v1948 = vpack.c.bf16 %v1940, %v1940
        %v1949 = vpack.c.bf16 %v1941, %v1941
        %v1950 = vpack.c.bf16 %v1942, %v1942
        %v1951 = vpack.c.bf16 %v1943, %v1943
        %v1952 = vpack.c.bf16 %v1944, %v1944
        %v1953 = vpack.c.bf16 %v1945, %v1945
        %v1954 = vpack.c.bf16 %v1946, %v1946
        %v1955 = vpack.c.bf16 %v1382, %v1382
        %v1956 = vpack.c.bf16 %v1383, %v1383
        %v1957 = vpack.c.bf16 %v1384, %v1384
        %v1958 = vpack.c.bf16 %v1385, %v1385
        %v1959 = vpack.c.bf16 %v1450, %v1450
        %v1960 = vpack.c.bf16 %v1451, %v1451
        %v1961 = vpack.c.bf16 %v1452, %v1452
        %v1962 = vpack.c.bf16 %v1453, %v1453
        %v1964 = vsel %vm1470, %v1947, 0
        %vm1966 = vcmask 1043456
        %v1968 = vsel %vm1966, %v1955, 0
        %1970 = vmatprep.subr.bf16.mxu0 0
        %1971 = vmatpush1.bf16.msra.mxu0 0
        %1972 = vmatprep.subr.bf16.mxu0 0
        %1973 = vmatpush1.bf16.msra.mxu0 0
        %1974 = vmatprep.subr.bf16.mxu0 0
        %1975 = vmatpush1.bf16.msra.mxu0 0
        %1976 = vmatprep.subr.bf16.mxu0 0
        %1977 = vmatpush1.bf16.msra.mxu0 0
        %1978 = vmatprep.subr.bf16.mxu0 0
        %1979 = vmatpush1.bf16.msra.mxu0 0
        %1980 = vmatprep.subr.bf16.mxu0 0
        %1981 = vmatpush1.bf16.msra.mxu0 0
        %1982 = vmatprep.subr.bf16.mxu0 0
        %1983 = vmatpush1.bf16.msra.mxu0 0
        %1984 = vmatprep.subr.bf16.mxu0 0
        %1985 = vmatpush1.bf16.msra.mxu0 %v1968
        %1986 = vmatprep.subr.bf16.mxu0 0
        %1987 = vmatpush2.bf16.msra.mxu0 0
        %1988 = vmatprep.subr.bf16.mxu0 0
        %1989 = vmatpush2.bf16.msra.mxu0 0
        %1990 = vmatprep.subr.bf16.mxu0 0
        %1991 = vmatpush2.bf16.msra.mxu0 0
        %1992 = vmatprep.subr.bf16.mxu0 0
        %1993 = vmatpush2.bf16.msra.mxu0 0
        %1994 = vmatprep.subr.bf16.mxu0 0
        %1995 = vmatpush2.bf16.msra.mxu0 0
        %1996 = vmatprep.subr.bf16.mxu0 0
        %1997 = vmatpush2.bf16.msra.mxu0 0
        %1998 = vmatprep.subr.bf16.mxu0 0
        %1999 = vmatpush2.bf16.msra.mxu0 0
        %2000 = vmatprep.subr.bf16.mxu0 0
        %2001 = vmatpush2.bf16.msra.mxu0 0
        %2002 = vmatprep.mubr.bf16.mxu0 0
        %2003 = vmatmul.mubr.bf16.gmra.mxu0 %v1964
        %v2004 = vpop.f32.mrf.mxu0
        %v2005 = vadd.f32 0.0, %v2004
        %v2006 = vpop.f32.mrf.mxu0
        %v2007 = vpop.f32.mrf.mxu0
        %v2008 = vpop.f32.mrf.mxu0
        %2009 = vdwg.mxu0
        %v2011 = vsel %vm1470, %v1948, 0
        %v2014 = vsel %vm1966, %v1956, 0
        %2016 = vmatprep.subr.bf16.mxu0 0
        %2017 = vmatpush1.bf16.msra.mxu0 0
        %2018 = vmatprep.subr.bf16.mxu0 0
        %2019 = vmatpush1.bf16.msra.mxu0 0
        %2020 = vmatprep.subr.bf16.mxu0 0
        %2021 = vmatpush1.bf16.msra.mxu0 0
        %2022 = vmatprep.subr.bf16.mxu0 0
        %2023 = vmatpush1.bf16.msra.mxu0 0
        %2024 = vmatprep.subr.bf16.mxu0 0
        %2025 = vmatpush1.bf16.msra.mxu0 0
        %2026 = vmatprep.subr.bf16.mxu0 0
        %2027 = vmatpush1.bf16.msra.mxu0 0
        %2028 = vmatprep.subr.bf16.mxu0 0
        %2029 = vmatpush1.bf16.msra.mxu0 0
        %2030 = vmatprep.subr.bf16.mxu0 0
        %2031 = vmatpush1.bf16.msra.mxu0 %v2014
        %2032 = vmatprep.subr.bf16.mxu0 0
        %2033 = vmatpush2.bf16.msra.mxu0 0
        %2034 = vmatprep.subr.bf16.mxu0 0
        %2035 = vmatpush2.bf16.msra.mxu0 0
        %2036 = vmatprep.subr.bf16.mxu0 0
        %2037 = vmatpush2.bf16.msra.mxu0 0
        %2038 = vmatprep.subr.bf16.mxu0 0
        %2039 = vmatpush2.bf16.msra.mxu0 0
        %2040 = vmatprep.subr.bf16.mxu0 0
        %2041 = vmatpush2.bf16.msra.mxu0 0
        %2042 = vmatprep.subr.bf16.mxu0 0
        %2043 = vmatpush2.bf16.msra.mxu0 0
        %2044 = vmatprep.subr.bf16.mxu0 0
        %2045 = vmatpush2.bf16.msra.mxu0 0
        %2046 = vmatprep.subr.bf16.mxu0 0
        %2047 = vmatpush2.bf16.msra.mxu0 0
        %2048 = vmatprep.mubr.bf16.mxu0 0
        %2049 = vmatmul.mubr.bf16.gmra.mxu0 %v2011
        %v2050 = vpop.f32.mrf.mxu0
        %v2051 = vadd.f32 0.0, %v2050
        %v2052 = vpop.f32.mrf.mxu0
        %v2053 = vpop.f32.mrf.mxu0
        %v2054 = vpop.f32.mrf.mxu0
        %2055 = vdwg.mxu0
        %v2057 = vsel %vm1470, %v1949, 0
        %v2060 = vsel %vm1966, %v1957, 0
        %2062 = vmatprep.subr.bf16.mxu0 0
        %2063 = vmatpush1.bf16.msra.mxu0 0
        %2064 = vmatprep.subr.bf16.mxu0 0
        %2065 = vmatpush1.bf16.msra.mxu0 0
        %2066 = vmatprep.subr.bf16.mxu0 0
        %2067 = vmatpush1.bf16.msra.mxu0 0
        %2068 = vmatprep.subr.bf16.mxu0 0
        %2069 = vmatpush1.bf16.msra.mxu0 0
        %2070 = vmatprep.subr.bf16.mxu0 0
        %2071 = vmatpush1.bf16.msra.mxu0 0
        %2072 = vmatprep.subr.bf16.mxu0 0
        %2073 = vmatpush1.bf16.msra.mxu0 0
        %2074 = vmatprep.subr.bf16.mxu0 0
        %2075 = vmatpush1.bf16.msra.mxu0 0
        %2076 = vmatprep.subr.bf16.mxu0 0
        %2077 = vmatpush1.bf16.msra.mxu0 %v2060
        %2078 = vmatprep.subr.bf16.mxu0 0
        %2079 = vmatpush2.bf16.msra.mxu0 0
        %2080 = vmatprep.subr.bf16.mxu0 0
        %2081 = vmatpush2.bf16.msra.mxu0 0
        %2082 = vmatprep.subr.bf16.mxu0 0
        %2083 = vmatpush2.bf16.msra.mxu0 0
        %2084 = vmatprep.subr.bf16.mxu0 0
        %2085 = vmatpush2.bf16.msra.mxu0 0
        %2086 = vmatprep.subr.bf16.mxu0 0
        %2087 = vmatpush2.bf16.msra.mxu0 0
        %2088 = vmatprep.subr.bf16.mxu0 0
        %2089 = vmatpush2.bf16.msra.mxu0 0
        %2090 = vmatprep.subr.bf16.mxu0 0
        %2091 = vmatpush2.bf16.msra.mxu0 0
        %2092 = vmatprep.subr.bf16.mxu0 0
        %2093 = vmatpush2.bf16.msra.mxu0 0
        %2094 = vmatprep.mubr.bf16.mxu0 0
        %2095 = vmatmul.mubr.bf16.gmra.mxu0 %v2057
        %v2096 = vpop.f32.mrf.mxu0
        %v2097 = vadd.f32 0.0, %v2096
        %v2098 = vpop.f32.mrf.mxu0
        %v2099 = vpop.f32.mrf.mxu0
        %v2100 = vpop.f32.mrf.mxu0
        %2101 = vdwg.mxu0
        %v2103 = vsel %vm1470, %v1950, 0
        %v2106 = vsel %vm1966, %v1958, 0
        %2108 = vmatprep.subr.bf16.mxu0 0
        %2109 = vmatpush1.bf16.msra.mxu0 0
        %2110 = vmatprep.subr.bf16.mxu0 0
        %2111 = vmatpush1.bf16.msra.mxu0 0
        %2112 = vmatprep.subr.bf16.mxu0 0
        %2113 = vmatpush1.bf16.msra.mxu0 0
        %2114 = vmatprep.subr.bf16.mxu0 0
        %2115 = vmatpush1.bf16.msra.mxu0 0
        %2116 = vmatprep.subr.bf16.mxu0 0
        %2117 = vmatpush1.bf16.msra.mxu0 0
        %2118 = vmatprep.subr.bf16.mxu0 0
        %2119 = vmatpush1.bf16.msra.mxu0 0
        %2120 = vmatprep.subr.bf16.mxu0 0
        %2121 = vmatpush1.bf16.msra.mxu0 0
        %2122 = vmatprep.subr.bf16.mxu0 0
        %2123 = vmatpush1.bf16.msra.mxu0 %v2106
        %2124 = vmatprep.subr.bf16.mxu0 0
        %2125 = vmatpush2.bf16.msra.mxu0 0
        %2126 = vmatprep.subr.bf16.mxu0 0
        %2127 = vmatpush2.bf16.msra.mxu0 0
        %2128 = vmatprep.subr.bf16.mxu0 0
        %2129 = vmatpush2.bf16.msra.mxu0 0
        %2130 = vmatprep.subr.bf16.mxu0 0
        %2131 = vmatpush2.bf16.msra.mxu0 0
        %2132 = vmatprep.subr.bf16.mxu0 0
        %2133 = vmatpush2.bf16.msra.mxu0 0
        %2134 = vmatprep.subr.bf16.mxu0 0
        %2135 = vmatpush2.bf16.msra.mxu0 0
        %2136 = vmatprep.subr.bf16.mxu0 0
        %2137 = vmatpush2.bf16.msra.mxu0 0
        %2138 = vmatprep.subr.bf16.mxu0 0
        %2139 = vmatpush2.bf16.msra.mxu0 0
        %2140 = vmatprep.mubr.bf16.mxu0 0
        %2141 = vmatmul.mubr.bf16.gmra.mxu0 %v2103
        %v2142 = vpop.f32.mrf.mxu0
        %v2143 = vadd.f32 0.0, %v2142
        %v2144 = vpop.f32.mrf.mxu0
        %v2145 = vpop.f32.mrf.mxu0
        %v2146 = vpop.f32.mrf.mxu0
        %2147 = vdwg.mxu0
        %v2149 = vsel %vm1470, %v1951, 0
        %v2152 = vsel %vm1966, %v1959, 0
        %2154 = vmatprep.subr.bf16.mxu0 0
        %2155 = vmatpush1.bf16.msra.mxu0 0
        %2156 = vmatprep.subr.bf16.mxu0 0
        %2157 = vmatpush1.bf16.msra.mxu0 0
        %2158 = vmatprep.subr.bf16.mxu0 0
        %2159 = vmatpush1.bf16.msra.mxu0 0
        %2160 = vmatprep.subr.bf16.mxu0 0
        %2161 = vmatpush1.bf16.msra.mxu0 0
        %2162 = vmatprep.subr.bf16.mxu0 0
        %2163 = vmatpush1.bf16.msra.mxu0 0
        %2164 = vmatprep.subr.bf16.mxu0 0
        %2165 = vmatpush1.bf16.msra.mxu0 0
        %2166 = vmatprep.subr.bf16.mxu0 0
        %2167 = vmatpush1.bf16.msra.mxu0 0
        %2168 = vmatprep.subr.bf16.mxu0 0
        %2169 = vmatpush1.bf16.msra.mxu0 %v2152
        %2170 = vmatprep.subr.bf16.mxu0 0
        %2171 = vmatpush2.bf16.msra.mxu0 0
        %2172 = vmatprep.subr.bf16.mxu0 0
        %2173 = vmatpush2.bf16.msra.mxu0 0
        %2174 = vmatprep.subr.bf16.mxu0 0
        %2175 = vmatpush2.bf16.msra.mxu0 0
        %2176 = vmatprep.subr.bf16.mxu0 0
        %2177 = vmatpush2.bf16.msra.mxu0 0
        %2178 = vmatprep.subr.bf16.mxu0 0
        %2179 = vmatpush2.bf16.msra.mxu0 0
        %2180 = vmatprep.subr.bf16.mxu0 0
        %2181 = vmatpush2.bf16.msra.mxu0 0
        %2182 = vmatprep.subr.bf16.mxu0 0
        %2183 = vmatpush2.bf16.msra.mxu0 0
        %2184 = vmatprep.subr.bf16.mxu0 0
        %2185 = vmatpush2.bf16.msra.mxu0 0
        %2186 = vmatprep.mubr.bf16.mxu0 0
        %2187 = vmatmul.mubr.bf16.gmra.mxu0 %v2149
        %v2188 = vpop.f32.mrf.mxu0
        %v2189 = vadd.f32 0.0, %v2188
        %v2190 = vpop.f32.mrf.mxu0
        %v2191 = vpop.f32.mrf.mxu0
        %v2192 = vpop.f32.mrf.mxu0
        %2193 = vdwg.mxu0
        %v2195 = vsel %vm1470, %v1952, 0
        %v2198 = vsel %vm1966, %v1960, 0
        %2200 = vmatprep.subr.bf16.mxu0 0
        %2201 = vmatpush1.bf16.msra.mxu0 0
        %2202 = vmatprep.subr.bf16.mxu0 0
        %2203 = vmatpush1.bf16.msra.mxu0 0
        %2204 = vmatprep.subr.bf16.mxu0 0
        %2205 = vmatpush1.bf16.msra.mxu0 0
        %2206 = vmatprep.subr.bf16.mxu0 0
        %2207 = vmatpush1.bf16.msra.mxu0 0
        %2208 = vmatprep.subr.bf16.mxu0 0
        %2209 = vmatpush1.bf16.msra.mxu0 0
        %2210 = vmatprep.subr.bf16.mxu0 0
        %2211 = vmatpush1.bf16.msra.mxu0 0
        %2212 = vmatprep.subr.bf16.mxu0 0
        %2213 = vmatpush1.bf16.msra.mxu0 0
        %2214 = vmatprep.subr.bf16.mxu0 0
        %2215 = vmatpush1.bf16.msra.mxu0 %v2198
        %2216 = vmatprep.subr.bf16.mxu0 0
        %2217 = vmatpush2.bf16.msra.mxu0 0
        %2218 = vmatprep.subr.bf16.mxu0 0
        %2219 = vmatpush2.bf16.msra.mxu0 0
        %2220 = vmatprep.subr.bf16.mxu0 0
        %2221 = vmatpush2.bf16.msra.mxu0 0
        %2222 = vmatprep.subr.bf16.mxu0 0
        %2223 = vmatpush2.bf16.msra.mxu0 0
        %2224 = vmatprep.subr.bf16.mxu0 0
        %2225 = vmatpush2.bf16.msra.mxu0 0
        %2226 = vmatprep.subr.bf16.mxu0 0
        %2227 = vmatpush2.bf16.msra.mxu0 0
        %2228 = vmatprep.subr.bf16.mxu0 0
        %2229 = vmatpush2.bf16.msra.mxu0 0
        %2230 = vmatprep.subr.bf16.mxu0 0
        %2231 = vmatpush2.bf16.msra.mxu0 0
        %2232 = vmatprep.mubr.bf16.mxu0 0
        %2233 = vmatmul.mubr.bf16.gmra.mxu0 %v2195
        %v2234 = vpop.f32.mrf.mxu0
        %v2235 = vadd.f32 0.0, %v2234
        %v2236 = vpop.f32.mrf.mxu0
        %v2237 = vpop.f32.mrf.mxu0
        %v2238 = vpop.f32.mrf.mxu0
        %2239 = vdwg.mxu0
        %v2241 = vsel %vm1470, %v1953, 0
        %v2244 = vsel %vm1966, %v1961, 0
        %2246 = vmatprep.subr.bf16.mxu0 0
        %2247 = vmatpush1.bf16.msra.mxu0 0
        %2248 = vmatprep.subr.bf16.mxu0 0
        %2249 = vmatpush1.bf16.msra.mxu0 0
        %2250 = vmatprep.subr.bf16.mxu0 0
        %2251 = vmatpush1.bf16.msra.mxu0 0
        %2252 = vmatprep.subr.bf16.mxu0 0
        %2253 = vmatpush1.bf16.msra.mxu0 0
        %2254 = vmatprep.subr.bf16.mxu0 0
        %2255 = vmatpush1.bf16.msra.mxu0 0
        %2256 = vmatprep.subr.bf16.mxu0 0
        %2257 = vmatpush1.bf16.msra.mxu0 0
        %2258 = vmatprep.subr.bf16.mxu0 0
        %2259 = vmatpush1.bf16.msra.mxu0 0
        %2260 = vmatprep.subr.bf16.mxu0 0
        %2261 = vmatpush1.bf16.msra.mxu0 %v2244
        %2262 = vmatprep.subr.bf16.mxu0 0
        %2263 = vmatpush2.bf16.msra.mxu0 0
        %2264 = vmatprep.subr.bf16.mxu0 0
        %2265 = vmatpush2.bf16.msra.mxu0 0
        %2266 = vmatprep.subr.bf16.mxu0 0
        %2267 = vmatpush2.bf16.msra.mxu0 0
        %2268 = vmatprep.subr.bf16.mxu0 0
        %2269 = vmatpush2.bf16.msra.mxu0 0
        %2270 = vmatprep.subr.bf16.mxu0 0
        %2271 = vmatpush2.bf16.msra.mxu0 0
        %2272 = vmatprep.subr.bf16.mxu0 0
        %2273 = vmatpush2.bf16.msra.mxu0 0
        %2274 = vmatprep.subr.bf16.mxu0 0
        %2275 = vmatpush2.bf16.msra.mxu0 0
        %2276 = vmatprep.subr.bf16.mxu0 0
        %2277 = vmatpush2.bf16.msra.mxu0 0
        %2278 = vmatprep.mubr.bf16.mxu0 0
        %2279 = vmatmul.mubr.bf16.gmra.mxu0 %v2241
        %v2280 = vpop.f32.mrf.mxu0
        %v2281 = vadd.f32 0.0, %v2280
        %v2282 = vpop.f32.mrf.mxu0
        %v2283 = vpop.f32.mrf.mxu0
        %v2284 = vpop.f32.mrf.mxu0
        %2285 = vdwg.mxu0
        %v2287 = vsel %vm1470, %v1954, 0
        %v2290 = vsel %vm1966, %v1962, 0
        %2292 = vmatprep.subr.bf16.mxu0 0
        %2293 = vmatpush1.bf16.msra.mxu0 0
        %2294 = vmatprep.subr.bf16.mxu0 0
        %2295 = vmatpush1.bf16.msra.mxu0 0
        %2296 = vmatprep.subr.bf16.mxu0 0
        %2297 = vmatpush1.bf16.msra.mxu0 0
        %2298 = vmatprep.subr.bf16.mxu0 0
        %2299 = vmatpush1.bf16.msra.mxu0 0
        %2300 = vmatprep.subr.bf16.mxu0 0
        %2301 = vmatpush1.bf16.msra.mxu0 0
        %2302 = vmatprep.subr.bf16.mxu0 0
        %2303 = vmatpush1.bf16.msra.mxu0 0
        %2304 = vmatprep.subr.bf16.mxu0 0
        %2305 = vmatpush1.bf16.msra.mxu0 0
        %2306 = vmatprep.subr.bf16.mxu0 0
        %2307 = vmatpush1.bf16.msra.mxu0 %v2290
        %2308 = vmatprep.subr.bf16.mxu0 0
        %2309 = vmatpush2.bf16.msra.mxu0 0
        %2310 = vmatprep.subr.bf16.mxu0 0
        %2311 = vmatpush2.bf16.msra.mxu0 0
        %2312 = vmatprep.subr.bf16.mxu0 0
        %2313 = vmatpush2.bf16.msra.mxu0 0
        %2314 = vmatprep.subr.bf16.mxu0 0
        %2315 = vmatpush2.bf16.msra.mxu0 0
        %2316 = vmatprep.subr.bf16.mxu0 0
        %2317 = vmatpush2.bf16.msra.mxu0 0
        %2318 = vmatprep.subr.bf16.mxu0 0
        %2319 = vmatpush2.bf16.msra.mxu0 0
        %2320 = vmatprep.subr.bf16.mxu0 0
        %2321 = vmatpush2.bf16.msra.mxu0 0
        %2322 = vmatprep.subr.bf16.mxu0 0
        %2323 = vmatpush2.bf16.msra.mxu0 0
        %2324 = vmatprep.mubr.bf16.mxu0 0
        %2325 = vmatmul.mubr.bf16.gmra.mxu0 %v2287
        %v2326 = vpop.f32.mrf.mxu0
        %v2327 = vadd.f32 0.0, %v2326
        %v2328 = vpop.f32.mrf.mxu0
        %v2329 = vpop.f32.mrf.mxu0
        %v2330 = vpop.f32.mrf.mxu0
        %2331 = vdwg.mxu0
        %v2332 = vcombine.low %v2005, %v2097
        %v2333 = vcombine.high %v2005, %v2097
        %v2335 = vunpack.c.l.s4 1983009808
        %v2336 = vunpack.c.0.s8 %v2335
        %v2337 = vlaneseq
        %v2338 = vshrl.u32 %v2337, 7
        %v2339 = vsub.s32 %v2336, %v2338
        %v2340 = vrot.slane %v2332, %v2339
        %v2342 = vunpack.c.l.s4 1983009808
        %v2343 = vunpack.c.0.s8 %v2342
        %v2344 = vlaneseq
        %v2345 = vshrl.u32 %v2344, 7
        %v2346 = vsub.s32 %v2343, %v2345
        %v2347 = vrot.slane %v2333, %v2346
        %v2348 = vcombine.low %v2051, %v2143
        %v2349 = vcombine.high %v2051, %v2143
        %v2351 = vunpack.c.l.s4 1983009808
        %v2352 = vunpack.c.0.s8 %v2351
        %v2353 = vlaneseq
        %v2354 = vshrl.u32 %v2353, 7
        %v2355 = vsub.s32 %v2352, %v2354
        %v2356 = vrot.slane %v2348, %v2355
        %v2358 = vunpack.c.l.s4 1983009808
        %v2359 = vunpack.c.0.s8 %v2358
        %v2360 = vlaneseq
        %v2361 = vshrl.u32 %v2360, 7
        %v2362 = vsub.s32 %v2359, %v2361
        %v2363 = vrot.slane %v2349, %v2362
        %v2364 = vcombine.low %v2340, %v2356
        %v2365 = vcombine.high %v2340, %v2356
        %v2367 = vunpack.c.l.s4 1934713408
        %v2368 = vunpack.c.0.s8 %v2367
        %v2369 = vlaneseq
        %v2370 = vshrl.u32 %v2369, 7
        %v2371 = vsub.s32 %v2368, %v2370
        %v2372 = vrot.slane %v2364, %v2371
        %v2374 = vunpack.c.l.s4 1934713408
        %v2375 = vunpack.c.0.s8 %v2374
        %v2376 = vlaneseq
        %v2377 = vshrl.u32 %v2376, 7
        %v2378 = vsub.s32 %v2375, %v2377
        %v2379 = vrot.slane %v2365, %v2378
        %v2380 = vcombine.low %v2347, %v2363
        %v2381 = vcombine.high %v2347, %v2363
        %v2383 = vunpack.c.l.s4 1934713408
        %v2384 = vunpack.c.0.s8 %v2383
        %v2385 = vlaneseq
        %v2386 = vshrl.u32 %v2385, 7
        %v2387 = vsub.s32 %v2384, %v2386
        %v2388 = vrot.slane %v2380, %v2387
        %v2390 = vunpack.c.l.s4 1934713408
        %v2391 = vunpack.c.0.s8 %v2390
        %v2392 = vlaneseq
        %v2393 = vshrl.u32 %v2392, 7
        %v2394 = vsub.s32 %v2391, %v2393
        %v2395 = vrot.slane %v2381, %v2394
        %v2396 = vcombine.high %v2372, 0.0
        %v2397 = vcombine.high %v2379, 0.0
        %v2398 = vcombine.high %v2388, 0.0
        %v2399 = vcombine.high %v2395, 0.0
        %v2400 = vcombine.low %v2189, %v2281
        %v2401 = vcombine.high %v2189, %v2281
        %v2403 = vunpack.c.l.s4 1983009808
        %v2404 = vunpack.c.0.s8 %v2403
        %v2405 = vlaneseq
        %v2406 = vshrl.u32 %v2405, 7
        %v2407 = vsub.s32 %v2404, %v2406
        %v2408 = vrot.slane %v2400, %v2407
        %v2410 = vunpack.c.l.s4 1983009808
        %v2411 = vunpack.c.0.s8 %v2410
        %v2412 = vlaneseq
        %v2413 = vshrl.u32 %v2412, 7
        %v2414 = vsub.s32 %v2411, %v2413
        %v2415 = vrot.slane %v2401, %v2414
        %v2416 = vcombine.low %v2235, %v2327
        %v2417 = vcombine.high %v2235, %v2327
        %v2419 = vunpack.c.l.s4 1983009808
        %v2420 = vunpack.c.0.s8 %v2419
        %v2421 = vlaneseq
        %v2422 = vshrl.u32 %v2421, 7
        %v2423 = vsub.s32 %v2420, %v2422
        %v2424 = vrot.slane %v2416, %v2423
        %v2426 = vunpack.c.l.s4 1983009808
        %v2427 = vunpack.c.0.s8 %v2426
        %v2428 = vlaneseq
        %v2429 = vshrl.u32 %v2428, 7
        %v2430 = vsub.s32 %v2427, %v2429
        %v2431 = vrot.slane %v2417, %v2430
        %v2432 = vcombine.low %v2408, %v2424
        %v2433 = vcombine.high %v2408, %v2424
        %v2435 = vunpack.c.l.s4 1934713408
        %v2436 = vunpack.c.0.s8 %v2435
        %v2437 = vlaneseq
        %v2438 = vshrl.u32 %v2437, 7
        %v2439 = vsub.s32 %v2436, %v2438
        %v2440 = vrot.slane %v2432, %v2439
        %v2442 = vunpack.c.l.s4 1934713408
        %v2443 = vunpack.c.0.s8 %v2442
        %v2444 = vlaneseq
        %v2445 = vshrl.u32 %v2444, 7
        %v2446 = vsub.s32 %v2443, %v2445
        %v2447 = vrot.slane %v2433, %v2446
        %v2448 = vcombine.low %v2415, %v2431
        %v2449 = vcombine.high %v2415, %v2431
        %v2451 = vunpack.c.l.s4 1934713408
        %v2452 = vunpack.c.0.s8 %v2451
        %v2453 = vlaneseq
        %v2454 = vshrl.u32 %v2453, 7
        %v2455 = vsub.s32 %v2452, %v2454
        %v2456 = vrot.slane %v2448, %v2455
        %v2458 = vunpack.c.l.s4 1934713408
        %v2459 = vunpack.c.0.s8 %v2458
        %v2460 = vlaneseq
        %v2461 = vshrl.u32 %v2460, 7
        %v2462 = vsub.s32 %v2459, %v2461
        %v2463 = vrot.slane %v2449, %v2462
        %v2464 = vcombine.high %v2440, 0.0
        %v2465 = vcombine.high %v2447, 0.0
        %v2466 = vcombine.high %v2456, 0.0
        %v2467 = vcombine.high %v2463, 0.0
        %v2468 = vcombine.low %v2372, %v2379
        %v2470 = vunpack.c.l.s4 1983009808
        %v2471 = vunpack.c.0.s8 %v2470
        %v2472 = vlaneseq
        %v2473 = vshrl.u32 %v2472, 7
        %v2474 = vsub.s32 %v2471, %v2473
        %v2475 = vrot.slane %v2468, %v2474
        %v2476 = vcombine.low %v2396, %v2397
        %v2478 = vunpack.c.l.s4 1983009808
        %v2479 = vunpack.c.0.s8 %v2478
        %v2480 = vlaneseq
        %v2481 = vshrl.u32 %v2480, 7
        %v2482 = vsub.s32 %v2479, %v2481
        %v2483 = vrot.slane %v2476, %v2482
        %v2484 = vcombine.low %v2388, %v2395
        %v2486 = vunpack.c.l.s4 1983009808
        %v2487 = vunpack.c.0.s8 %v2486
        %v2488 = vlaneseq
        %v2489 = vshrl.u32 %v2488, 7
        %v2490 = vsub.s32 %v2487, %v2489
        %v2491 = vrot.slane %v2484, %v2490
        %v2492 = vcombine.low %v2398, %v2399
        %v2494 = vunpack.c.l.s4 1983009808
        %v2495 = vunpack.c.0.s8 %v2494
        %v2496 = vlaneseq
        %v2497 = vshrl.u32 %v2496, 7
        %v2498 = vsub.s32 %v2495, %v2497
        %v2499 = vrot.slane %v2492, %v2498
        %v2500 = vcombine.low %v2475, %v2483
        %v2501 = vcombine.high %v2475, %v2483
        %v2503 = vunpack.c.l.s4 1934713408
        %v2504 = vunpack.c.0.s8 %v2503
        %v2505 = vlaneseq
        %v2506 = vshrl.u32 %v2505, 7
        %v2507 = vsub.s32 %v2504, %v2506
        %v2508 = vrot.slane %v2500, %v2507
        %v2510 = vunpack.c.l.s4 1934713408
        %v2511 = vunpack.c.0.s8 %v2510
        %v2512 = vlaneseq
        %v2513 = vshrl.u32 %v2512, 7
        %v2514 = vsub.s32 %v2511, %v2513
        %v2515 = vrot.slane %v2501, %v2514
        %v2516 = vcombine.low %v2491, %v2499
        %v2517 = vcombine.high %v2491, %v2499
        %v2519 = vunpack.c.l.s4 1934713408
        %v2520 = vunpack.c.0.s8 %v2519
        %v2521 = vlaneseq
        %v2522 = vshrl.u32 %v2521, 7
        %v2523 = vsub.s32 %v2520, %v2522
        %v2524 = vrot.slane %v2516, %v2523
        %v2526 = vunpack.c.l.s4 1934713408
        %v2527 = vunpack.c.0.s8 %v2526
        %v2528 = vlaneseq
        %v2529 = vshrl.u32 %v2528, 7
        %v2530 = vsub.s32 %v2527, %v2529
        %v2531 = vrot.slane %v2517, %v2530
        %v2532 = vcombine.low %v2508, %v2524
        %v2533 = vcombine.high %v2508, %v2524
        %v2534 = vcombine.low %v2515, %v2531
        %v2535 = vcombine.high %v2515, %v2531
        %v2536 = vcombine.low %v2440, %v2447
        %v2538 = vunpack.c.l.s4 1983009808
        %v2539 = vunpack.c.0.s8 %v2538
        %v2540 = vlaneseq
        %v2541 = vshrl.u32 %v2540, 7
        %v2542 = vsub.s32 %v2539, %v2541
        %v2543 = vrot.slane %v2536, %v2542
        %v2544 = vcombine.low %v2464, %v2465
        %v2546 = vunpack.c.l.s4 1983009808
        %v2547 = vunpack.c.0.s8 %v2546
        %v2548 = vlaneseq
        %v2549 = vshrl.u32 %v2548, 7
        %v2550 = vsub.s32 %v2547, %v2549
        %v2551 = vrot.slane %v2544, %v2550
        %v2552 = vcombine.low %v2456, %v2463
        %v2554 = vunpack.c.l.s4 1983009808
        %v2555 = vunpack.c.0.s8 %v2554
        %v2556 = vlaneseq
        %v2557 = vshrl.u32 %v2556, 7
        %v2558 = vsub.s32 %v2555, %v2557
        %v2559 = vrot.slane %v2552, %v2558
        %v2560 = vcombine.low %v2466, %v2467
        %v2562 = vunpack.c.l.s4 1983009808
        %v2563 = vunpack.c.0.s8 %v2562
        %v2564 = vlaneseq
        %v2565 = vshrl.u32 %v2564, 7
        %v2566 = vsub.s32 %v2563, %v2565
        %v2567 = vrot.slane %v2560, %v2566
        %v2568 = vcombine.low %v2543, %v2551
        %v2569 = vcombine.high %v2543, %v2551
        %v2571 = vunpack.c.l.s4 1934713408
        %v2572 = vunpack.c.0.s8 %v2571
        %v2573 = vlaneseq
        %v2574 = vshrl.u32 %v2573, 7
        %v2575 = vsub.s32 %v2572, %v2574
        %v2576 = vrot.slane %v2568, %v2575
        %v2578 = vunpack.c.l.s4 1934713408
        %v2579 = vunpack.c.0.s8 %v2578
        %v2580 = vlaneseq
        %v2581 = vshrl.u32 %v2580, 7
        %v2582 = vsub.s32 %v2579, %v2581
        %v2583 = vrot.slane %v2569, %v2582
        %v2584 = vcombine.low %v2559, %v2567
        %v2585 = vcombine.high %v2559, %v2567
        %v2587 = vunpack.c.l.s4 1934713408
        %v2588 = vunpack.c.0.s8 %v2587
        %v2589 = vlaneseq
        %v2590 = vshrl.u32 %v2589, 7
        %v2591 = vsub.s32 %v2588, %v2590
        %v2592 = vrot.slane %v2584, %v2591
        %v2594 = vunpack.c.l.s4 1934713408
        %v2595 = vunpack.c.0.s8 %v2594
        %v2596 = vlaneseq
        %v2597 = vshrl.u32 %v2596, 7
        %v2598 = vsub.s32 %v2595, %v2597
        %v2599 = vrot.slane %v2585, %v2598
        %v2600 = vcombine.low %v2576, %v2592
        %v2601 = vcombine.high %v2576, %v2592
        %v2602 = vcombine.low %v2583, %v2599
        %v2603 = vcombine.high %v2583, %v2599
        %2606 = vrot.lane.b32.xlu0 %v2533, 8
        %v2607 = vpop.permute.xlu0 %2606
        %2608 = vrot.lane.b32.xlu0 %v2601, 8
        %v2609 = vpop.permute.xlu0 %2608
        %2614 = vrot.lane.b32.xlu0 %v2534, 16
        %v2615 = vpop.permute.xlu0 %2614
        %2616 = vrot.lane.b32.xlu0 %v2602, 16
        %v2617 = vpop.permute.xlu0 %2616
        %2622 = vrot.lane.b32.xlu0 %v2535, 24
        %v2623 = vpop.permute.xlu0 %2622
        %2624 = vrot.lane.b32.xlu0 %v2603, 24
        %v2625 = vpop.permute.xlu0 %2624
        %v2628 = vsel %vm1470, %v2532, %v2607
        %v2629 = vsel %vm1470, %v2600, %v2609
        %vm2630 = vcmask 130048
        %v2631 = vsel %vm2630, %v2628, %v2615
        %v2632 = vsel %vm2630, %v2629, %v2617
        %vm2633 = vcmask 195584
        %v2634 = vsel %vm2633, %v2631, %v2623
        %v2635 = vsel %vm2633, %v2632, %v2625
        %v2636 = vpack.c.bf16 %v2635, %v2634
        %v2637 = vld [vmem:[%s463] sm:$0xf]
        %v2638 = vld [vmem:[%s463 + $0x4] sm:$0xf]
        %v2639 = vld [vmem:[%s463 + $0x8] sm:$0xf]
        %v2640 = vld [vmem:[%s463 + $0xc] sm:$0xf]
        %v2641 = vlaneseq
        %v2642 = vshrl.u32 %v2641, 7
        %v2643 = vsub.s32 0, %v2642
        %v2644 = vrot.slane %v499, %v2643
        %v2649 = vunpack.c.l.b16 %v2637
        %v2650 = vunpack.c.l.b16 %v2638
        %v2651 = vunpack.c.l.b16 %v2639
        %v2652 = vunpack.c.l.b16 %v2640
        %v2653 = vpack.c.b16 %v2650, %v2649
        %v2654 = vpack.c.b16 %v2652, %v2651
        %v2658 = vsel %vm525, %v2636, 0
        %2660 = vmatprep.subr.bf16.mxu0 0
        %2661 = vmatpush1.bf16.msra.mxu0 0
        %2662 = vmatprep.subr.bf16.mxu0 0
        %2663 = vmatpush1.bf16.msra.mxu0 0
        %2664 = vmatprep.subr.bf16.mxu0 0
        %2665 = vmatpush1.bf16.msra.mxu0 0
        %2666 = vmatprep.subr.bf16.mxu0 0
        %2667 = vmatpush1.bf16.msra.mxu0 0
        %2668 = vmatprep.subr.bf16.mxu0 0
        %2669 = vmatpush1.bf16.msra.mxu0 0
        %2670 = vmatprep.subr.bf16.mxu0 0
        %2671 = vmatpush1.bf16.msra.mxu0 0
        %2672 = vmatprep.subr.bf16.mxu0 0
        %2673 = vmatpush1.bf16.msra.mxu0 %v2654
        %2674 = vmatprep.subr.bf16.mxu0 0
        %2675 = vmatpush1.bf16.msra.mxu0 %v2653
        %2676 = vmatprep.subr.bf16.mxu0 0
        %2677 = vmatpush2.bf16.msra.mxu0 0
        %2678 = vmatprep.subr.bf16.mxu0 0
        %2679 = vmatpush2.bf16.msra.mxu0 0
        %2680 = vmatprep.subr.bf16.mxu0 0
        %2681 = vmatpush2.bf16.msra.mxu0 0
        %2682 = vmatprep.subr.bf16.mxu0 0
        %2683 = vmatpush2.bf16.msra.mxu0 0
        %2684 = vmatprep.subr.bf16.mxu0 0
        %2685 = vmatpush2.bf16.msra.mxu0 0
        %2686 = vmatprep.subr.bf16.mxu0 0
        %2687 = vmatpush2.bf16.msra.mxu0 0
        %2688 = vmatprep.subr.bf16.mxu0 0
        %2689 = vmatpush2.bf16.msra.mxu0 0
        %2690 = vmatprep.subr.bf16.mxu0 0
        %2691 = vmatpush2.bf16.msra.mxu0 0
        %2692 = vmatprep.mubr.bf16.mxu0 0
        %2693 = vmatmul.mubr.bf16.gmra.mxu0 %v2658
        %v2694 = vpop.f32.mrf.mxu0
        %v2695 = vadd.f32 %v2644, %v2694
        %v2696 = vpop.f32.mrf.mxu0
        %v2697 = vpop.f32.mrf.mxu0
        %v2698 = vadd.f32 %v2644, %v2697
        %v2699 = vpop.f32.mrf.mxu0
        %2700 = vdwg.mxu0
        %v2701 = vadd.f32 %v495, %v2695
        %v2702 = vadd.f32 %v496, %v2698
        %v2703 = vsel %vm525, %v2701, 0.0
        %2704 = vadd.xlane.f32.xlu0 %v2703
        %v2705 = vpop.xlane.xlu0 %2704
        %v2706 = vsel %vm525, %v2702, 0.0
        %2707 = vadd.xlane.f32.xlu0 %v2706
        %v2708 = vpop.xlane.xlu0 %2707
        %v2709 = vrcp.pop 32.0
        %v2710 = vmul.f32 %v2705, %v2709
        %v2711 = vmul.f32 %v2708, %v2709
        %v2712 = vsub.f32 %v2701, %v2710
        %v2713 = vsub.f32 %v2702, %v2711
        %v2714 = vmul.f32 %v2712, %v2712
        %v2715 = vmul.f32 %v2713, %v2713
        %v2716 = vsel %vm525, %v2714, 0.0
        %2717 = vadd.xlane.f32.xlu0 %v2716
        %v2718 = vpop.xlane.xlu0 %2717
        %v2719 = vsel %vm525, %v2715, 0.0
        %2720 = vadd.xlane.f32.xlu0 %v2719
        %v2721 = vpop.xlane.xlu0 %2720
        %v2722 = vmul.f32 %v2718, %v2709
        %v2723 = vmul.f32 %v2721, %v2709
        %v2724 = vadd.f32 %v2722, 1e-05
        %v2725 = vadd.f32 %v2723, 1e-05
        %v2726 = vrsqrt.pop %v2724
        %v2727 = vrsqrt.pop %v2725
        %v2728 = vmul.f32 %v2712, %v2726
        %v2729 = vmul.f32 %v2713, %v2727
        %v2730 = vlaneseq
        %v2731 = vshrl.u32 %v2730, 7
        %v2732 = vsub.s32 2, %v2731
        %v2733 = vrot.slane %v499, %v2732
        %v2734 = vmul.f32 %v2728, %v2733
        %v2735 = vmul.f32 %v2729, %v2733
        %v2736 = vlaneseq
        %v2737 = vshrl.u32 %v2736, 7
        %v2738 = vsub.s32 3, %v2737
        %v2739 = vrot.slane %v499, %v2738
        %v2740 = vadd.f32 %v2734, %v2739
        %v2741 = vadd.f32 %v2735, %v2739
        %v2742 = vpack.c.bf16 %v2741, %v2740
        %v2743 = vld [vmem:[%s468] sm:$0xf]
        %v2744 = vld [vmem:[%s468 + $0x4] sm:$0xf]
        %v2745 = vld [vmem:[%s468 + $0x8] sm:$0xf]
        %v2746 = vld [vmem:[%s468 + $0xc] sm:$0xf]
        %v2748 = vlaneseq
        %v2749 = vshrl.u32 %v2748, 7
        %v2750 = vsub.s32 0, %v2749
        %v2751 = vrot.slane %v501, %v2750
        %v2757 = vunpack.c.l.b16 %v2743
        %v2758 = vunpack.c.l.b16 %v2744
        %v2759 = vunpack.c.l.b16 %v2745
        %v2760 = vunpack.c.l.b16 %v2746
        %v2761 = vpack.c.b16 %v2758, %v2757
        %v2762 = vpack.c.b16 %v2760, %v2759
        %v2766 = vsel %vm525, %v2742, 0
        %2768 = vmatprep.subr.bf16.mxu0 0
        %2769 = vmatpush1.bf16.msra.mxu0 0
        %2770 = vmatprep.subr.bf16.mxu0 0
        %2771 = vmatpush1.bf16.msra.mxu0 0
        %2772 = vmatprep.subr.bf16.mxu0 0
        %2773 = vmatpush1.bf16.msra.mxu0 0
        %2774 = vmatprep.subr.bf16.mxu0 0
        %2775 = vmatpush1.bf16.msra.mxu0 0
        %2776 = vmatprep.subr.bf16.mxu0 0
        %2777 = vmatpush1.bf16.msra.mxu0 0
        %2778 = vmatprep.subr.bf16.mxu0 0
        %2779 = vmatpush1.bf16.msra.mxu0 0
        %2780 = vmatprep.subr.bf16.mxu0 0
        %2781 = vmatpush1.bf16.msra.mxu0 %v2762
        %2782 = vmatprep.subr.bf16.mxu0 0
        %2783 = vmatpush1.bf16.msra.mxu0 %v2761
        %2784 = vmatprep.subr.bf16.mxu0 0
        %2785 = vmatpush2.bf16.msra.mxu0 0
        %2786 = vmatprep.subr.bf16.mxu0 0
        %2787 = vmatpush2.bf16.msra.mxu0 0
        %2788 = vmatprep.subr.bf16.mxu0 0
        %2789 = vmatpush2.bf16.msra.mxu0 0
        %2790 = vmatprep.subr.bf16.mxu0 0
        %2791 = vmatpush2.bf16.msra.mxu0 0
        %2792 = vmatprep.subr.bf16.mxu0 0
        %2793 = vmatpush2.bf16.msra.mxu0 0
        %2794 = vmatprep.subr.bf16.mxu0 0
        %2795 = vmatpush2.bf16.msra.mxu0 0
        %2796 = vmatprep.subr.bf16.mxu0 0
        %2797 = vmatpush2.bf16.msra.mxu0 0
        %2798 = vmatprep.subr.bf16.mxu0 0
        %2799 = vmatpush2.bf16.msra.mxu0 0
        %2800 = vmatprep.mubr.bf16.mxu0 0
        %2801 = vmatmul.mubr.bf16.gmra.mxu0 %v2766
        %v2802 = vpop.f32.mrf.mxu0
        %v2803 = vadd.f32 %v2751, %v2802
        %v2804 = vpop.f32.mrf.mxu0
        %v2805 = vpop.f32.mrf.mxu0
        %v2806 = vadd.f32 %v2751, %v2805
        %v2807 = vpop.f32.mrf.mxu0
        %2808 = vdwg.mxu0
        %v2809 = vmax.f32 %v2803, 0.0
        %v2810 = vmax.f32 %v2806, 0.0
        %v2811 = vpack.c.bf16 %v2810, %v2809
        %v2812 = vld [vmem:[%s473] sm:$0xf]
        %v2813 = vld [vmem:[%s473 + $0x4] sm:$0xf]
        %v2814 = vld [vmem:[%s473 + $0x8] sm:$0xf]
        %v2815 = vld [vmem:[%s473 + $0xc] sm:$0xf]
        %v2816 = vld [vmem:[%s473 + $0x10] sm:$0xf]
        %v2817 = vld [vmem:[%s473 + $0x14] sm:$0xf]
        %v2818 = vld [vmem:[%s473 + $0x18] sm:$0xf]
        %v2819 = vld [vmem:[%s473 + $0x1c] sm:$0xf]
        %v2820 = vlaneseq
        %v2821 = vshrl.u32 %v2820, 7
        %v2822 = vsub.s32 1, %v2821
        %v2823 = vrot.slane %v499, %v2822
        %v2832 = vunpack.c.l.b16 %v2812
        %v2833 = vunpack.c.l.b16 %v2813
        %v2834 = vunpack.c.l.b16 %v2814
        %v2835 = vunpack.c.l.b16 %v2815
        %v2836 = vunpack.c.l.b16 %v2816
        %v2837 = vunpack.c.l.b16 %v2817
        %v2838 = vunpack.c.l.b16 %v2818
        %v2839 = vunpack.c.l.b16 %v2819
        %v2840 = vpack.c.b16 %v2833, %v2832
        %v2841 = vpack.c.b16 %v2835, %v2834
        %v2842 = vpack.c.b16 %v2837, %v2836
        %v2843 = vpack.c.b16 %v2839, %v2838
        %vm2848 = vcmask 523264
        %v2850 = vsel %vm2848, %v2811, 0
        %2852 = vmatprep.subr.bf16.mxu0 0
        %2853 = vmatpush1.bf16.msra.mxu0 0
        %2854 = vmatprep.subr.bf16.mxu0 0
        %2855 = vmatpush1.bf16.msra.mxu0 0
        %2856 = vmatprep.subr.bf16.mxu0 0
        %2857 = vmatpush1.bf16.msra.mxu0 0
        %2858 = vmatprep.subr.bf16.mxu0 0
        %2859 = vmatpush1.bf16.msra.mxu0 0
        %2860 = vmatprep.subr.bf16.mxu0 0
        %2861 = vmatpush1.bf16.msra.mxu0 %v2843
        %2862 = vmatprep.subr.bf16.mxu0 0
        %2863 = vmatpush1.bf16.msra.mxu0 %v2842
        %2864 = vmatprep.subr.bf16.mxu0 0
        %2865 = vmatpush1.bf16.msra.mxu0 %v2841
        %2866 = vmatprep.subr.bf16.mxu0 0
        %2867 = vmatpush1.bf16.msra.mxu0 %v2840
        %2868 = vmatprep.subr.bf16.mxu0 0
        %2869 = vmatpush2.bf16.msra.mxu0 0
        %2870 = vmatprep.subr.bf16.mxu0 0
        %2871 = vmatpush2.bf16.msra.mxu0 0
        %2872 = vmatprep.subr.bf16.mxu0 0
        %2873 = vmatpush2.bf16.msra.mxu0 0
        %2874 = vmatprep.subr.bf16.mxu0 0
        %2875 = vmatpush2.bf16.msra.mxu0 0
        %2876 = vmatprep.subr.bf16.mxu0 0
        %2877 = vmatpush2.bf16.msra.mxu0 0
        %2878 = vmatprep.subr.bf16.mxu0 0
        %2879 = vmatpush2.bf16.msra.mxu0 0
        %2880 = vmatprep.subr.bf16.mxu0 0
        %2881 = vmatpush2.bf16.msra.mxu0 0
        %2882 = vmatprep.subr.bf16.mxu0 0
        %2883 = vmatpush2.bf16.msra.mxu0 0
        %2884 = vmatprep.mubr.bf16.mxu0 0
        %2885 = vmatmul.mubr.bf16.gmra.mxu0 %v2850
        %v2886 = vpop.f32.mrf.mxu0
        %v2887 = vadd.f32 %v2823, %v2886
        %v2888 = vpop.f32.mrf.mxu0
        %v2889 = vpop.f32.mrf.mxu0
        %v2890 = vadd.f32 %v2823, %v2889
        %v2891 = vpop.f32.mrf.mxu0
        %2892 = vdwg.mxu0
        %v2893 = vadd.f32 %v2740, %v2887
        %v2894 = vadd.f32 %v2741, %v2890
        %v2895 = vsel %vm525, %v2893, 0.0
        %2896 = vadd.xlane.f32.xlu0 %v2895
        %v2897 = vpop.xlane.xlu0 %2896
        %v2898 = vsel %vm525, %v2894, 0.0
        %2899 = vadd.xlane.f32.xlu0 %v2898
        %v2900 = vpop.xlane.xlu0 %2899
        %v2901 = vmul.f32 %v2897, %v2709
        %v2902 = vmul.f32 %v2900, %v2709
        %v2903 = vsub.f32 %v2893, %v2901
        %v2904 = vsub.f32 %v2894, %v2902
        %v2905 = vmul.f32 %v2903, %v2903
        %v2906 = vmul.f32 %v2904, %v2904
        %v2907 = vsel %vm525, %v2905, 0.0
        %2908 = vadd.xlane.f32.xlu0 %v2907
        %v2909 = vpop.xlane.xlu0 %2908
        %v2910 = vsel %vm525, %v2906, 0.0
        %2911 = vadd.xlane.f32.xlu0 %v2910
        %v2912 = vpop.xlane.xlu0 %2911
        %v2913 = vmul.f32 %v2909, %v2709
        %v2914 = vmul.f32 %v2912, %v2709
        %v2915 = vadd.f32 %v2913, 1e-05
        %v2916 = vadd.f32 %v2914, 1e-05
        %v2917 = vrsqrt.pop %v2915
        %v2918 = vrsqrt.pop %v2916
        %v2919 = vmul.f32 %v2903, %v2917
        %v2920 = vmul.f32 %v2904, %v2918
        %v2921 = vlaneseq
        %v2922 = vshrl.u32 %v2921, 7
        %v2923 = vsub.s32 4, %v2922
        %v2924 = vrot.slane %v499, %v2923
        %v2925 = vmul.f32 %v2919, %v2924
        %v2926 = vmul.f32 %v2920, %v2924
        %v2927 = vlaneseq
        %v2928 = vshrl.u32 %v2927, 7
        %v2929 = vsub.s32 5, %v2928
        %v2930 = vrot.slane %v499, %v2929
        %v2931 = vadd.f32 %v2925, %v2930
        %v2932 = vadd.f32 %v2926, %v2930
        %2933 = vst.msk [vmem:[#allocation5] sm:$0xff] %vm525, %v2931
        %2934 = vst.msk [vmem:[#allocation5 + $0x8] sm:$0xff] %vm525, %v2932
        // Predicated region
        $region65: #{tpu_custom_call.1} parent=55 // pred_check
          %p2935 = pneg %p286
        $region66: #{tpu_custom_call.1} parent=55 // pred_check_branch
          %2937 = sbr.rel (%p2935) target = $region68
        $region67: #{tpu_custom_call.1} parent=55 // pred_region
          %s2938 = smul.u32 2, %s26
          %s2940 = ssub.s32 256, 256
          %2941 = vsyncadd [#allocation4], %s2940
          %s2942 = smul.addr %s2938, 128
          %s2943 = scalar_lea.hbm %s9, %s2942
          %s2944 = sshll.u32 [#allocation5], 4
          %s2945 = int_to_ptr.vmem [resolvable:$true] %s2944
          %2950 = dma.vmem_to_hbm [thread:$0]  %s2945, 256, %s2943, [#allocation4], 128, 128, 8
        $region68: #{tpu_custom_call.1} parent=55 // pred_fallthru
          _
        // Predicated region
        $region69: #{tpu_custom_call.1} parent=55 // pred_check
          %p2951 = pneg %p286
        $region70: #{tpu_custom_call.1} parent=55 // pred_check_branch
          %2953 = sbr.rel (%p2951) target = $region72
        $region71: #{tpu_custom_call.1} parent=55 // pred_region
          %2954 = dma.done [#allocation4], 256
        $region72: #{tpu_custom_call.1} parent=55 // pred_fallthru
          _
      $region56: #{tpu_custom_call.1} parent=5 // pred_fallthru
        _
      %p2955 = scmp.le.s32.totalorder 2, %s17
      // Predicated region
      $region73: #{tpu_custom_call.1} parent=5 // pred_check
        %p2956 = pneg %p2955
      $region74: #{tpu_custom_call.1} parent=5 // pred_check_branch
        %2958 = sbr.rel (%p2956) target = $region76
      $region75: #{tpu_custom_call.1} parent=5 // pred_region
        %s2959 = ssub.s32 %s17, 2
      $region76: #{tpu_custom_call.1} parent=5 // pred_fallthru
        _
    $region6: #{tpu_custom_call.1} parent=1 // loop_footer
      %s21 = sadd.s32 1, %s17
    $region7: #{tpu_custom_call.1} parent=1 // loop_footer_branch
      %16 = sbr.rel target = $region3
    $region8: #{tpu_custom_call.1} parent=1 // loop_exit
      _
    %2960 = vsyncpa [#allocation3], 1
    %s2961 = scalar_lea.sflag [#allocation3], 1
    %2962 = vsyncpa %s2961, 1
    %2963 = vsyncpa [#allocation4], 1
    %s2964 = scalar_lea.sflag [#allocation4], 1
    %2965 = vsyncpa %s2964, 1

</llo_original>
